<compile_context>
chip_gen: v7x
topology: tpu7x:2x2x1
jax: 0.10.0
libtpu: 0.0.40
codegen_flags: <defaults>
</compile_context>

<pallas_src>
import functools

import jax
import jax.numpy as jnp
from jax.experimental import pallas as pl
from jax.experimental.pallas import tpu as pltpu


# ----------------------------------------------------------------------------
# Fused projection + block-local sparse attention kernel.
#   x?_ref : (1, G, bs, D) f32   -- G query blocks per step, heads packed in D
#   w?_ref : (D, D)        bf16  -- resident, already transposed to (Din, Dout)
#   b?_ref : (1, D)        f32   -- resident (scale folded into wq/bq)
#   o_ref  : (1, G, bs, D) bf16
# Only the diagonal key/value block is ever loaded, so no mask is built.
# ----------------------------------------------------------------------------
def _fused_sparse_attn_kernel(xq_ref, xk_ref, xv_ref,
                              wq_ref, wk_ref, wv_ref,
                              bq_ref, bk_ref, bv_ref,
                              o_ref, *, num_heads, d_k):
    _, G, bs, D = xq_ref.shape
    R = G * bs

    # Inputs arrive f32 straight from HBM (cheaper than a separate cast pass);
    # cast to bf16 once for the MXU.
    xq = xq_ref[0].reshape(R, D).astype(jnp.bfloat16)
    xk = xk_ref[0].reshape(R, D).astype(jnp.bfloat16)
    xv = xv_ref[0].reshape(R, D).astype(jnp.bfloat16)

    # Packed projections: full-D output width, bf16 MXU, f32 accumulate.
    # (1/sqrt(d_k) is already folded into wq/bq by the wrapper.)
    q = (jnp.dot(xq, wq_ref[...], preferred_element_type=jnp.float32)
         + bq_ref[...]).astype(jnp.bfloat16).reshape(G, bs, D)
    k = (jnp.dot(xk, wk_ref[...], preferred_element_type=jnp.float32)
         + bk_ref[...]).astype(jnp.bfloat16).reshape(G, bs, D)
    v = (jnp.dot(xv, wv_ref[...], preferred_element_type=jnp.float32)
         + bv_ref[...]).astype(jnp.bfloat16).reshape(G, bs, D)

    # Block-diagonal attention.  Heads are processed per-head (for realistic
    # d_k in {64, 128} the lane slices are tile-aligned and free); only one
    # head's f32 score block is live at a time, and all head outputs are
    # lane-concatenated so the output store is a single full-width write.
    # TODO(synk): for large num_heads, fold heads into a dot_general batch dim
    # (needs an in-VMEM (bs, H) transpose); kept on proven constructs for now.
    outs = []
    for h in range(num_heads):
        lo = h * d_k
        qh = q[:, :, lo:lo + d_k]
        kh = k[:, :, lo:lo + d_k]
        vh = v[:, :, lo:lo + d_k]

        # scores = q @ k^T per block (batched over G), contract last dims.
        s = jax.lax.dot_general(
            qh, kh,
            dimension_numbers=(((2,), (2,)), ((0,), (0,))),
            preferred_element_type=jnp.float32)            # (G, bs, bs) f32

        # numerically stable softmax over the block's keys (all allowed)
        m = jnp.max(s, axis=-1, keepdims=True)
        p = jnp.exp(s - m)
        denom = jnp.sum(p, axis=-1, keepdims=True)
        # approx reciprocal uses the EUP slot (~free); perturbation ~1e-3 rel.
        inv = pl.reciprocal(denom, approx=True)

        oh = jax.lax.dot_general(
            p.astype(jnp.bfloat16), vh,
            dimension_numbers=(((2,), (1,)), ((0,), (0,))),
            preferred_element_type=jnp.float32)            # (G, bs, d_k) f32
        outs.append(oh * inv)

    out = jnp.concatenate(outs, axis=-1)                   # (G, bs, D) f32
    o_ref[0] = out.astype(o_ref.dtype)                     # single lane-dense store


# ----------------------------------------------------------------------------
# Tiling / VMEM sizing helpers
# ----------------------------------------------------------------------------
def _tpu_vmem_capacity_bytes():
    try:
        info = pltpu.get_tpu_info()
        for attr in ("vmem_capacity_bytes", "vmem_bytes", "vmem_size_bytes"):
            val = getattr(info, attr, None)
            if val:
                return int(val)
    except Exception:
        pass
    return 64 * 1024 * 1024   # conservative default (v7x per-core VMEM)


def _choose_blocks_per_step(n_blocks, block_size, d_model, vmem_budget_bytes,
                            max_blocks_per_step=None):
    """Pick G (query blocks per grid step) under a VMEM budget that counts the
    double-buffered I/O tiles, the resident weights and the in-kernel f32
    score / accumulator intermediates."""
    io_per_row = d_model * (3 * 4 * 2 + 2 * 2)   # 3 f32 inputs + bf16 out, dbl-buffered
    proj_per_row = d_model * (3 * 2 + 4)         # bf16 q/k/v + f32 packed output value
    score_per_row = block_size * 4               # one head's f32 score block
    bytes_per_row = io_per_row + proj_per_row + score_per_row
    weight_bytes = 3 * d_model * d_model * 2 * 2 + 3 * d_model * 4 * 2
    avail = max(0, vmem_budget_bytes - weight_bytes)
    max_rows = max(block_size, min(4096, avail // max(1, bytes_per_row)))
    max_g = max(1, max_rows // block_size)
    if max_blocks_per_step is not None:
        max_g = min(max_g, int(max_blocks_per_step))
    g = max(1, min(n_blocks, max_g))
    # NOTE: a prime n_blocks larger than max_g falls back to g=1 (correct, slower).
    while n_blocks % g != 0:
        g -= 1
    return g


# ----------------------------------------------------------------------------
# Full module forward (fused single pallas_call)
# ----------------------------------------------------------------------------
def sparse_self_attention(query, key, value, params, *, num_heads, block_size,
                          out_dtype=jnp.bfloat16, max_blocks_per_step=None):
    B, Lq, D = query.shape
    _, Lk, _ = key.shape
    # TODO(synk): cross-length (Lq != Lk) block-sparse attention (incl. the
    # all-masked/NaN rows torch produces when Lq > Lk) is not implemented here.
    assert Lq == Lk, "this Pallas path assumes query_len == key_len"
    L = Lq
    d_k = D // num_heads
    assert num_heads * d_k == D
    # TODO(synk): ragged tail block (L % block_size != 0) would need an in-tile mask.
    assert L % block_size == 0, "L must be a multiple of block_size"
    n_blocks = L // block_size

    # Fold the 1/sqrt(d_k) scale into the query projection (zero runtime cost).
    scale = 1.0 / (d_k ** 0.5)
    wq = (params["wq"] * scale).T.astype(jnp.bfloat16)     # (Din, Dout)
    bq = (params["bq"] * scale).astype(jnp.float32).reshape(1, D)
    wk = params["wk"].T.astype(jnp.bfloat16)
    bk = params["bk"].astype(jnp.float32).reshape(1, D)
    wv = params["wv"].T.astype(jnp.bfloat16)
    bv = params["bv"].astype(jnp.float32).reshape(1, D)
    # TODO(synk): for very large D (>= 4K) the 3*D*D bf16 resident weights
    # should be tiled over their K dim (extra grid axis) to fit v7x's 64 MiB.

    vmem_cap = _tpu_vmem_capacity_bytes()
    budget = int(vmem_cap * 0.45)
    G = _choose_blocks_per_step(n_blocks, block_size, D, budget,
                                max_blocks_per_step=max_blocks_per_step)
    n_steps = n_blocks // G

    qb = query.reshape(B, n_blocks, block_size, D)
    kb = key.reshape(B, n_blocks, block_size, D)
    vb = value.reshape(B, n_blocks, block_size, D)

    kernel = functools.partial(_fused_sparse_attn_kernel,
                               num_heads=num_heads, d_k=d_k)

    flops = 3 * 2 * B * L * D * D + 4 * B * L * block_size * D
    transc = B * num_heads * L * (block_size + 1)
    bytes_accessed = (3 * B * L * D * 4 + 3 * D * D * 2 + 3 * D * 4
                      + B * L * D * jnp.dtype(out_dtype).itemsize)

    blk_x = (1, G, block_size, D)
    out = pl.pallas_call(
        kernel,
        out_shape=jax.ShapeDtypeStruct((B, n_blocks, block_size, D), out_dtype),
        grid=(B, n_steps),
        in_specs=[
            pl.BlockSpec(blk_x, lambda b, t: (b, t, 0, 0)),
            pl.BlockSpec(blk_x, lambda b, t: (b, t, 0, 0)),   # only the diagonal K block
            pl.BlockSpec(blk_x, lambda b, t: (b, t, 0, 0)),   # only the diagonal V block
            pl.BlockSpec((D, D), lambda b, t: (0, 0)),        # resident weights
            pl.BlockSpec((D, D), lambda b, t: (0, 0)),
            pl.BlockSpec((D, D), lambda b, t: (0, 0)),
            pl.BlockSpec((1, D), lambda b, t: (0, 0)),        # resident biases
            pl.BlockSpec((1, D), lambda b, t: (0, 0)),
            pl.BlockSpec((1, D), lambda b, t: (0, 0)),
        ],
        out_specs=pl.BlockSpec(blk_x, lambda b, t: (b, t, 0, 0)),
        compiler_params=pltpu.CompilerParams(
            dimension_semantics=("parallel", "parallel"),
            vmem_limit_bytes=int(vmem_cap * 0.75),
        ),
        cost_estimate=pl.CostEstimate(
            flops=int(flops), transcendentals=int(transc),
            bytes_accessed=int(bytes_accessed)),
    )(qb, kb, vb, wq, wk, wv, bq, bk, bv)
    return out.reshape(B, L, D)


# ----------------------------------------------------------------------------
# References for verification
# ----------------------------------------------------------------------------
def _block_mask(L, block_size):
    row = jnp.arange(L)[:, None]
    col = jnp.arange(L)[None, :]
    return (row // block_size) == (col // block_size)


def reference_matched(query, key, value, params, *, num_heads, block_size,
                      out_dtype=jnp.bfloat16):
    """Pure-JAX reference mirroring the kernel's bf16-MXU numerics."""
    B, L, D = query.shape
    d_k = D // num_heads
    scale = 1.0 / (d_k ** 0.5)

    def proj(x, w_t, b):
        y = jnp.dot(x.astype(jnp.bfloat16), w_t.astype(jnp.bfloat16),
                    preferred_element_type=jnp.float32) + b.astype(jnp.float32)
        return y.astype(jnp.bfloat16)

    q = proj(query, (params["wq"] * scale).T, params["bq"] * scale)
    k = proj(key, params["wk"].T, params["bk"])
    v = proj(value, params["wv"].T, params["bv"])
    qh = q.reshape(B, L, num_heads, d_k).transpose(0, 2, 1, 3)
    kh = k.reshape(B, L, num_heads, d_k).transpose(0, 2, 1, 3)
    vh = v.reshape(B, L, num_heads, d_k).transpose(0, 2, 1, 3)

    s = jnp.einsum("bhqd,bhkd->bhqk", qh, kh, preferred_element_type=jnp.float32)
    s = jnp.where(_block_mask(L, block_size)[None, None], s, -jnp.inf)
    m = jnp.max(s, axis=-1, keepdims=True)
    p = jnp.exp(s - m)
    denom = jnp.sum(p, axis=-1, keepdims=True)
    out = jnp.einsum("bhqk,bhkd->bhqd", p.astype(jnp.bfloat16), vh,
                     preferred_element_type=jnp.float32) / denom
    out = out.transpose(0, 2, 1, 3).reshape(B, L, D)
    return out.astype(out_dtype)


def reference_f32(query, key, value, params, *, num_heads, block_size):
    """Faithful f32 reference of the original PyTorch module."""
    B, L, D = query.shape
    d_k = D // num_heads

    def proj(x, w, b):
        y = x @ w.T + b
        return y.reshape(B, L, num_heads, d_k).transpose(0, 2, 1, 3)

    q = proj(query, params["wq"], params["bq"])
    k = proj(key, params["wk"], params["bk"])
    v = proj(value, params["wv"], params["bv"])
    s = jnp.einsum("bhqd,bhkd->bhqk", q, k) / (d_k ** 0.5)
    s = jnp.where(_block_mask(L, block_size)[None, None], s, -jnp.inf)
    attn = jax.nn.softmax(s, axis=-1)
    out = jnp.einsum("bhqk,bhkd->bhqd", attn, v)
    return out.transpose(0, 2, 1, 3).reshape(B, L, D)


if __name__ == "__main__":
    B, L, D = 2, 16, 32
    num_heads, block_size = 4, 8

    key0 = jax.random.PRNGKey(0)
    ks = jax.random.split(key0, 9)
    query = jax.random.normal(ks[0], (B, L, D), jnp.float32)
    key_in = jax.random.normal(ks[1], (B, L, D), jnp.float32)
    value = jax.random.normal(ks[2], (B, L, D), jnp.float32)

    w_scale = 1.0 / (D ** 0.5)
    params = {
        "wq": jax.random.normal(ks[3], (D, D), jnp.float32) * w_scale,
        "bq": jax.random.normal(ks[4], (D,), jnp.float32) * w_scale,
        "wk": jax.random.normal(ks[5], (D, D), jnp.float32) * w_scale,
        "bk": jax.random.normal(ks[6], (D,), jnp.float32) * w_scale,
        "wv": jax.random.normal(ks[7], (D, D), jnp.float32) * w_scale,
        "bv": jax.random.normal(ks[8], (D,), jnp.float32) * w_scale,
    }

    out = sparse_self_attention(query, key_in, value, params,
                                num_heads=num_heads, block_size=block_size)
    out = jax.block_until_ready(out)
    assert out.shape == (B, L, D)
    assert out.dtype == jnp.bfloat16
    out32 = out.astype(jnp.float32)

    # Tight check vs. a reference that mirrors the kernel's bf16-MXU numerics.
    ref_m = reference_matched(query, key_in, value, params, num_heads=num_heads,
                              block_size=block_size).astype(jnp.float32)
    assert jnp.allclose(out32, ref_m, rtol=2e-2, atol=2e-2), "mismatch vs matched ref"

    # Loose check vs. the faithful f32 module semantics (bf16 MXU + bf16 out tol).
    ref_f = reference_f32(query, key_in, value, params,
                          num_heads=num_heads, block_size=block_size)
    assert jnp.allclose(out32, ref_f, rtol=8e-2, atol=8e-2), "mismatch vs f32 ref"

    # Second config: force G=1 to exercise the multi-step grid path.
    B2, L2 = 1, 32
    q2 = jax.random.normal(jax.random.PRNGKey(1), (B2, L2, D), jnp.float32)
    k2 = jax.random.normal(jax.random.PRNGKey(2), (B2, L2, D), jnp.float32)
    v2 = jax.random.normal(jax.random.PRNGKey(3), (B2, L2, D), jnp.float32)
    out2 = sparse_self_attention(q2, k2, v2, params, num_heads=num_heads,
                                 block_size=block_size, max_blocks_per_step=1)
    out2 = jax.block_until_ready(out2).astype(jnp.float32)
    ref2 = reference_f32(q2, k2, v2, params, num_heads=num_heads, block_size=block_size)
    assert jnp.allclose(out2, ref2, rtol=8e-2, atol=8e-2), "mismatch vs f32 ref (multi-step)"

    print("KERNEL_OK")
</pallas_src>

<mosaic_0001>
module attributes {stable_mosaic.version = 11 : i64} {
  func.func @_fused_sparse_attn_kernel(%arg0: i32, %arg1: i32, %arg2: memref<1x2x8x32xf32, #tpu.memory_space<vmem>>, %arg3: memref<1x2x8x32xf32, #tpu.memory_space<vmem>>, %arg4: memref<1x2x8x32xf32, #tpu.memory_space<vmem>>, %arg5: memref<32x32xbf16, #tpu.memory_space<vmem>>, %arg6: memref<32x32xbf16, #tpu.memory_space<vmem>>, %arg7: memref<32x32xbf16, #tpu.memory_space<vmem>>, %arg8: memref<1x32xf32, #tpu.memory_space<vmem>>, %arg9: memref<1x32xf32, #tpu.memory_space<vmem>>, %arg10: memref<1x32xf32, #tpu.memory_space<vmem>>, %arg11: memref<1x2x8x32xbf16, #tpu.memory_space<vmem>>) attributes {dimension_semantics = [#tpu.dimension_semantics<parallel>, #tpu.dimension_semantics<parallel>], iteration_bounds = array<i64: 2, 1>, scalar_prefetch = 0 : i64, scratch_operands = 0 : i64, tpu.core_type = #tpu.core_type<tc>, window_params = [{transform_indices = @transform_0, window_bounds = array<i64: 1, 2, 8, 32>}, {transform_indices = @transform_1, window_bounds = array<i64: 1, 2, 8, 32>}, {transform_indices = @transform_2, window_bounds = array<i64: 1, 2, 8, 32>}, {pipeline_mode = #tpu.pipeline_mode<synchronous>, transform_indices = @transform_3, window_bounds = array<i64: 32, 32>}, {pipeline_mode = #tpu.pipeline_mode<synchronous>, transform_indices = @transform_4, window_bounds = array<i64: 32, 32>}, {pipeline_mode = #tpu.pipeline_mode<synchronous>, transform_indices = @transform_5, window_bounds = array<i64: 32, 32>}, {pipeline_mode = #tpu.pipeline_mode<synchronous>, transform_indices = @transform_6, window_bounds = array<i64: 1, 32>}, {pipeline_mode = #tpu.pipeline_mode<synchronous>, transform_indices = @transform_7, window_bounds = array<i64: 1, 32>}, {pipeline_mode = #tpu.pipeline_mode<synchronous>, transform_indices = @transform_8, window_bounds = array<i64: 1, 32>}, {transform_indices = @transform_9, window_bounds = array<i64: 1, 2, 8, 32>}]} {
    %c0 = arith.constant 0 : index
    %c0_0 = arith.constant 0 : index
    %c0_1 = arith.constant 0 : index
    %c0_2 = arith.constant 0 : index
    %0 = vector.load %arg2[%c0, %c0_0, %c0_1, %c0_2] : memref<1x2x8x32xf32, #tpu.memory_space<vmem>>, vector<1x2x8x32xf32>
    %1 = vector.shape_cast %0 : vector<1x2x8x32xf32> to vector<2x8x32xf32>
    %2 = vector.shape_cast %1 : vector<2x8x32xf32> to vector<16x32xf32>
    %3 = arith.truncf %2 : vector<16x32xf32> to vector<16x32xbf16>
    %c0_3 = arith.constant 0 : index
    %c0_4 = arith.constant 0 : index
    %c0_5 = arith.constant 0 : index
    %c0_6 = arith.constant 0 : index
    %4 = vector.load %arg3[%c0_3, %c0_4, %c0_5, %c0_6] : memref<1x2x8x32xf32, #tpu.memory_space<vmem>>, vector<1x2x8x32xf32>
    %5 = vector.shape_cast %4 : vector<1x2x8x32xf32> to vector<2x8x32xf32>
    %6 = vector.shape_cast %5 : vector<2x8x32xf32> to vector<16x32xf32>
    %7 = arith.truncf %6 : vector<16x32xf32> to vector<16x32xbf16>
    %c0_7 = arith.constant 0 : index
    %c0_8 = arith.constant 0 : index
    %c0_9 = arith.constant 0 : index
    %c0_10 = arith.constant 0 : index
    %8 = vector.load %arg4[%c0_7, %c0_8, %c0_9, %c0_10] : memref<1x2x8x32xf32, #tpu.memory_space<vmem>>, vector<1x2x8x32xf32>
    %9 = vector.shape_cast %8 : vector<1x2x8x32xf32> to vector<2x8x32xf32>
    %10 = vector.shape_cast %9 : vector<2x8x32xf32> to vector<16x32xf32>
    %11 = arith.truncf %10 : vector<16x32xf32> to vector<16x32xbf16>
    %c0_11 = arith.constant 0 : index
    %c0_12 = arith.constant 0 : index
    %12 = vector.load %arg5[%c0_11, %c0_12] : memref<32x32xbf16, #tpu.memory_space<vmem>>, vector<32x32xbf16>
    %cst = arith.constant dense<0.000000e+00> : vector<16x32xf32>
    %13 = tpu.matmul %3, %12, %cst {dimension_numbers = #tpu.dot_dimension_numbers<[1], [0], [0], [1], [0, 0, 1, 1], [], []>} : vector<16x32xbf16>, vector<32x32xbf16>, vector<16x32xf32> -> vector<16x32xf32>
    %c0_13 = arith.constant 0 : index
    %c0_14 = arith.constant 0 : index
    %14 = vector.load %arg8[%c0_13, %c0_14] : memref<1x32xf32, #tpu.memory_space<vmem>>, vector<1x32xf32>
    %15 = vector.broadcast %14 : vector<1x32xf32> to vector<16x32xf32>
    %16 = arith.addf %13, %15 : vector<16x32xf32>
    %17 = arith.truncf %16 : vector<16x32xf32> to vector<16x32xbf16>
    %18 = vector.shape_cast %17 : vector<16x32xbf16> to vector<2x8x32xbf16>
    %c0_15 = arith.constant 0 : index
    %c0_16 = arith.constant 0 : index
    %19 = vector.load %arg6[%c0_15, %c0_16] : memref<32x32xbf16, #tpu.memory_space<vmem>>, vector<32x32xbf16>
    %cst_17 = arith.constant dense<0.000000e+00> : vector<16x32xf32>
    %20 = tpu.matmul %7, %19, %cst_17 {dimension_numbers = #tpu.dot_dimension_numbers<[1], [0], [0], [1], [0, 0, 1, 1], [], []>} : vector<16x32xbf16>, vector<32x32xbf16>, vector<16x32xf32> -> vector<16x32xf32>
    %c0_18 = arith.constant 0 : index
    %c0_19 = arith.constant 0 : index
    %21 = vector.load %arg9[%c0_18, %c0_19] : memref<1x32xf32, #tpu.memory_space<vmem>>, vector<1x32xf32>
    %22 = vector.broadcast %21 : vector<1x32xf32> to vector<16x32xf32>
    %23 = arith.addf %20, %22 : vector<16x32xf32>
    %24 = arith.truncf %23 : vector<16x32xf32> to vector<16x32xbf16>
    %25 = vector.shape_cast %24 : vector<16x32xbf16> to vector<2x8x32xbf16>
    %c0_20 = arith.constant 0 : index
    %c0_21 = arith.constant 0 : index
    %26 = vector.load %arg7[%c0_20, %c0_21] : memref<32x32xbf16, #tpu.memory_space<vmem>>, vector<32x32xbf16>
    %cst_22 = arith.constant dense<0.000000e+00> : vector<16x32xf32>
    %27 = tpu.matmul %11, %26, %cst_22 {dimension_numbers = #tpu.dot_dimension_numbers<[1], [0], [0], [1], [0, 0, 1, 1], [], []>} : vector<16x32xbf16>, vector<32x32xbf16>, vector<16x32xf32> -> vector<16x32xf32>
    %c0_23 = arith.constant 0 : index
    %c0_24 = arith.constant 0 : index
    %28 = vector.load %arg10[%c0_23, %c0_24] : memref<1x32xf32, #tpu.memory_space<vmem>>, vector<1x32xf32>
    %29 = vector.broadcast %28 : vector<1x32xf32> to vector<16x32xf32>
    %30 = arith.addf %27, %29 : vector<16x32xf32>
    %31 = arith.truncf %30 : vector<16x32xf32> to vector<16x32xbf16>
    %32 = vector.shape_cast %31 : vector<16x32xbf16> to vector<2x8x32xbf16>
    %33 = vector.extract_strided_slice %18 {offsets = [0, 0, 0], sizes = [2, 8, 8], strides = [1, 1, 1]} : vector<2x8x32xbf16> to vector<2x8x8xbf16>
    %34 = vector.extract_strided_slice %25 {offsets = [0, 0, 0], sizes = [2, 8, 8], strides = [1, 1, 1]} : vector<2x8x32xbf16> to vector<2x8x8xbf16>
    %35 = vector.extract_strided_slice %32 {offsets = [0, 0, 0], sizes = [2, 8, 8], strides = [1, 1, 1]} : vector<2x8x32xbf16> to vector<2x8x8xbf16>
    %cst_25 = arith.constant dense<0.000000e+00> : vector<2x8x8xf32>
    %36 = tpu.matmul %33, %34, %cst_25 {dimension_numbers = #tpu.dot_dimension_numbers<[2], [2], [1], [1], [0, 0, 0, 1, 1, 1], [0], [0]>} : vector<2x8x8xbf16>, vector<2x8x8xbf16>, vector<2x8x8xf32> -> vector<2x8x8xf32>
    %cst_26 = arith.constant dense<0xFF800000> : vector<2x8xf32>
    %37 = vector.multi_reduction <maximumf>, %36, %cst_26 [2] : vector<2x8x8xf32> to vector<2x8xf32>
    %38 = vector.shape_cast %37 : vector<2x8xf32> to vector<2x8x1xf32>
    %39 = vector.broadcast %38 : vector<2x8x1xf32> to vector<2x8x8xf32>
    %40 = arith.subf %36, %39 : vector<2x8x8xf32>
    %41 = math.exp %40 : vector<2x8x8xf32>
    %cst_27 = arith.constant dense<0.000000e+00> : vector<2x8xf32>
    %42 = vector.multi_reduction <add>, %41, %cst_27 [2] : vector<2x8x8xf32> to vector<2x8xf32>
    %43 = vector.shape_cast %42 : vector<2x8xf32> to vector<2x8x1xf32>
    %44 = tpu.reciprocal %43 {approx = true} : vector<2x8x1xf32> -> vector<2x8x1xf32>
    %45 = arith.truncf %41 : vector<2x8x8xf32> to vector<2x8x8xbf16>
    %cst_28 = arith.constant dense<0.000000e+00> : vector<2x8x8xf32>
    %46 = tpu.matmul %45, %35, %cst_28 {dimension_numbers = #tpu.dot_dimension_numbers<[2], [1], [1], [2], [0, 0, 0, 1, 1, 2], [0], [0]>} : vector<2x8x8xbf16>, vector<2x8x8xbf16>, vector<2x8x8xf32> -> vector<2x8x8xf32>
    %47 = vector.broadcast %44 : vector<2x8x1xf32> to vector<2x8x8xf32>
    %48 = arith.mulf %46, %47 : vector<2x8x8xf32>
    %49 = vector.extract_strided_slice %18 {offsets = [0, 0, 8], sizes = [2, 8, 8], strides = [1, 1, 1]} : vector<2x8x32xbf16> to vector<2x8x8xbf16>
    %50 = vector.extract_strided_slice %25 {offsets = [0, 0, 8], sizes = [2, 8, 8], strides = [1, 1, 1]} : vector<2x8x32xbf16> to vector<2x8x8xbf16>
    %51 = vector.extract_strided_slice %32 {offsets = [0, 0, 8], sizes = [2, 8, 8], strides = [1, 1, 1]} : vector<2x8x32xbf16> to vector<2x8x8xbf16>
    %cst_29 = arith.constant dense<0.000000e+00> : vector<2x8x8xf32>
    %52 = tpu.matmul %49, %50, %cst_29 {dimension_numbers = #tpu.dot_dimension_numbers<[2], [2], [1], [1], [0, 0, 0, 1, 1, 1], [0], [0]>} : vector<2x8x8xbf16>, vector<2x8x8xbf16>, vector<2x8x8xf32> -> vector<2x8x8xf32>
    %cst_30 = arith.constant dense<0xFF800000> : vector<2x8xf32>
    %53 = vector.multi_reduction <maximumf>, %52, %cst_30 [2] : vector<2x8x8xf32> to vector<2x8xf32>
    %54 = vector.shape_cast %53 : vector<2x8xf32> to vector<2x8x1xf32>
    %55 = vector.broadcast %54 : vector<2x8x1xf32> to vector<2x8x8xf32>
    %56 = arith.subf %52, %55 : vector<2x8x8xf32>
    %57 = math.exp %56 : vector<2x8x8xf32>
    %cst_31 = arith.constant dense<0.000000e+00> : vector<2x8xf32>
    %58 = vector.multi_reduction <add>, %57, %cst_31 [2] : vector<2x8x8xf32> to vector<2x8xf32>
    %59 = vector.shape_cast %58 : vector<2x8xf32> to vector<2x8x1xf32>
    %60 = tpu.reciprocal %59 {approx = true} : vector<2x8x1xf32> -> vector<2x8x1xf32>
    %61 = arith.truncf %57 : vector<2x8x8xf32> to vector<2x8x8xbf16>
    %cst_32 = arith.constant dense<0.000000e+00> : vector<2x8x8xf32>
    %62 = tpu.matmul %61, %51, %cst_32 {dimension_numbers = #tpu.dot_dimension_numbers<[2], [1], [1], [2], [0, 0, 0, 1, 1, 2], [0], [0]>} : vector<2x8x8xbf16>, vector<2x8x8xbf16>, vector<2x8x8xf32> -> vector<2x8x8xf32>
    %63 = vector.broadcast %60 : vector<2x8x1xf32> to vector<2x8x8xf32>
    %64 = arith.mulf %62, %63 : vector<2x8x8xf32>
    %65 = vector.extract_strided_slice %18 {offsets = [0, 0, 16], sizes = [2, 8, 8], strides = [1, 1, 1]} : vector<2x8x32xbf16> to vector<2x8x8xbf16>
    %66 = vector.extract_strided_slice %25 {offsets = [0, 0, 16], sizes = [2, 8, 8], strides = [1, 1, 1]} : vector<2x8x32xbf16> to vector<2x8x8xbf16>
    %67 = vector.extract_strided_slice %32 {offsets = [0, 0, 16], sizes = [2, 8, 8], strides = [1, 1, 1]} : vector<2x8x32xbf16> to vector<2x8x8xbf16>
    %cst_33 = arith.constant dense<0.000000e+00> : vector<2x8x8xf32>
    %68 = tpu.matmul %65, %66, %cst_33 {dimension_numbers = #tpu.dot_dimension_numbers<[2], [2], [1], [1], [0, 0, 0, 1, 1, 1], [0], [0]>} : vector<2x8x8xbf16>, vector<2x8x8xbf16>, vector<2x8x8xf32> -> vector<2x8x8xf32>
    %cst_34 = arith.constant dense<0xFF800000> : vector<2x8xf32>
    %69 = vector.multi_reduction <maximumf>, %68, %cst_34 [2] : vector<2x8x8xf32> to vector<2x8xf32>
    %70 = vector.shape_cast %69 : vector<2x8xf32> to vector<2x8x1xf32>
    %71 = vector.broadcast %70 : vector<2x8x1xf32> to vector<2x8x8xf32>
    %72 = arith.subf %68, %71 : vector<2x8x8xf32>
    %73 = math.exp %72 : vector<2x8x8xf32>
    %cst_35 = arith.constant dense<0.000000e+00> : vector<2x8xf32>
    %74 = vector.multi_reduction <add>, %73, %cst_35 [2] : vector<2x8x8xf32> to vector<2x8xf32>
    %75 = vector.shape_cast %74 : vector<2x8xf32> to vector<2x8x1xf32>
    %76 = tpu.reciprocal %75 {approx = true} : vector<2x8x1xf32> -> vector<2x8x1xf32>
    %77 = arith.truncf %73 : vector<2x8x8xf32> to vector<2x8x8xbf16>
    %cst_36 = arith.constant dense<0.000000e+00> : vector<2x8x8xf32>
    %78 = tpu.matmul %77, %67, %cst_36 {dimension_numbers = #tpu.dot_dimension_numbers<[2], [1], [1], [2], [0, 0, 0, 1, 1, 2], [0], [0]>} : vector<2x8x8xbf16>, vector<2x8x8xbf16>, vector<2x8x8xf32> -> vector<2x8x8xf32>
    %79 = vector.broadcast %76 : vector<2x8x1xf32> to vector<2x8x8xf32>
    %80 = arith.mulf %78, %79 : vector<2x8x8xf32>
    %81 = vector.extract_strided_slice %18 {offsets = [0, 0, 24], sizes = [2, 8, 8], strides = [1, 1, 1]} : vector<2x8x32xbf16> to vector<2x8x8xbf16>
    %82 = vector.extract_strided_slice %25 {offsets = [0, 0, 24], sizes = [2, 8, 8], strides = [1, 1, 1]} : vector<2x8x32xbf16> to vector<2x8x8xbf16>
    %83 = vector.extract_strided_slice %32 {offsets = [0, 0, 24], sizes = [2, 8, 8], strides = [1, 1, 1]} : vector<2x8x32xbf16> to vector<2x8x8xbf16>
    %cst_37 = arith.constant dense<0.000000e+00> : vector<2x8x8xf32>
    %84 = tpu.matmul %81, %82, %cst_37 {dimension_numbers = #tpu.dot_dimension_numbers<[2], [2], [1], [1], [0, 0, 0, 1, 1, 1], [0], [0]>} : vector<2x8x8xbf16>, vector<2x8x8xbf16>, vector<2x8x8xf32> -> vector<2x8x8xf32>
    %cst_38 = arith.constant dense<0xFF800000> : vector<2x8xf32>
    %85 = vector.multi_reduction <maximumf>, %84, %cst_38 [2] : vector<2x8x8xf32> to vector<2x8xf32>
    %86 = vector.shape_cast %85 : vector<2x8xf32> to vector<2x8x1xf32>
    %87 = vector.broadcast %86 : vector<2x8x1xf32> to vector<2x8x8xf32>
    %88 = arith.subf %84, %87 : vector<2x8x8xf32>
    %89 = math.exp %88 : vector<2x8x8xf32>
    %cst_39 = arith.constant dense<0.000000e+00> : vector<2x8xf32>
    %90 = vector.multi_reduction <add>, %89, %cst_39 [2] : vector<2x8x8xf32> to vector<2x8xf32>
    %91 = vector.shape_cast %90 : vector<2x8xf32> to vector<2x8x1xf32>
    %92 = tpu.reciprocal %91 {approx = true} : vector<2x8x1xf32> -> vector<2x8x1xf32>
    %93 = arith.truncf %89 : vector<2x8x8xf32> to vector<2x8x8xbf16>
    %cst_40 = arith.constant dense<0.000000e+00> : vector<2x8x8xf32>
    %94 = tpu.matmul %93, %83, %cst_40 {dimension_numbers = #tpu.dot_dimension_numbers<[2], [1], [1], [2], [0, 0, 0, 1, 1, 2], [0], [0]>} : vector<2x8x8xbf16>, vector<2x8x8xbf16>, vector<2x8x8xf32> -> vector<2x8x8xf32>
    %95 = vector.broadcast %92 : vector<2x8x1xf32> to vector<2x8x8xf32>
    %96 = arith.mulf %94, %95 : vector<2x8x8xf32>
    %97 = tpu.concatenate %48, %64, %80, %96 in 2 : vector<2x8x8xf32>, vector<2x8x8xf32>, vector<2x8x8xf32>, vector<2x8x8xf32> -> vector<2x8x32xf32>
    %98 = arith.truncf %97 : vector<2x8x32xf32> to vector<2x8x32xbf16>
    %c0_41 = arith.constant 0 : index
    %c0_42 = arith.constant 0 : index
    %c0_43 = arith.constant 0 : index
    %c0_44 = arith.constant 0 : index
    %99 = vector.load %arg11[%c0_41, %c0_42, %c0_43, %c0_44] : memref<1x2x8x32xbf16, #tpu.memory_space<vmem>>, vector<1x2x8x32xbf16>
    %100 = vector.shape_cast %99 : vector<1x2x8x32xbf16> to vector<2x8x32xbf16>
    %101 = vector.shape_cast %98 : vector<2x8x32xbf16> to vector<1x2x8x32xbf16>
    tpu.vector_store %arg11[%c0_41, %c0_42, %c0_43, %c0_44], %101 {strides = array<i32>} : memref<1x2x8x32xbf16, #tpu.memory_space<vmem>>, vector<1x2x8x32xbf16>,
    return
  }
  func.func @transform_0(%arg0: i32, %arg1: i32) -> (i32, i32, i32, i32) {
    %c0_i32 = arith.constant 0 : i32
    %c0_i32_0 = arith.constant 0 : i32
    %c0_i32_1 = arith.constant 0 : i32
    return %arg0, %arg1, %c0_i32, %c0_i32_0 : i32, i32, i32, i32
  }
  func.func @transform_1(%arg0: i32, %arg1: i32) -> (i32, i32, i32, i32) {
    %c0_i32 = arith.constant 0 : i32
    %c0_i32_0 = arith.constant 0 : i32
    %c0_i32_1 = arith.constant 0 : i32
    return %arg0, %arg1, %c0_i32, %c0_i32_0 : i32, i32, i32, i32
  }
  func.func @transform_2(%arg0: i32, %arg1: i32) -> (i32, i32, i32, i32) {
    %c0_i32 = arith.constant 0 : i32
    %c0_i32_0 = arith.constant 0 : i32
    %c0_i32_1 = arith.constant 0 : i32
    return %arg0, %arg1, %c0_i32, %c0_i32_0 : i32, i32, i32, i32
  }
  func.func @transform_3(%arg0: i32, %arg1: i32) -> (i32, i32) {
    %c0_i32 = arith.constant 0 : i32
    %c0_i32_0 = arith.constant 0 : i32
    %c0_i32_1 = arith.constant 0 : i32
    return %c0_i32, %c0_i32_0 : i32, i32
  }
  func.func @transform_4(%arg0: i32, %arg1: i32) -> (i32, i32) {
    %c0_i32 = arith.constant 0 : i32
    %c0_i32_0 = arith.constant 0 : i32
    %c0_i32_1 = arith.constant 0 : i32
    return %c0_i32, %c0_i32_0 : i32, i32
  }
  func.func @transform_5(%arg0: i32, %arg1: i32) -> (i32, i32) {
    %c0_i32 = arith.constant 0 : i32
    %c0_i32_0 = arith.constant 0 : i32
    %c0_i32_1 = arith.constant 0 : i32
    return %c0_i32, %c0_i32_0 : i32, i32
  }
  func.func @transform_6(%arg0: i32, %arg1: i32) -> (i32, i32) {
    %c0_i32 = arith.constant 0 : i32
    %c0_i32_0 = arith.constant 0 : i32
    %c0_i32_1 = arith.constant 0 : i32
    return %c0_i32, %c0_i32_0 : i32, i32
  }
  func.func @transform_7(%arg0: i32, %arg1: i32) -> (i32, i32) {
    %c0_i32 = arith.constant 0 : i32
    %c0_i32_0 = arith.constant 0 : i32
    %c0_i32_1 = arith.constant 0 : i32
    return %c0_i32, %c0_i32_0 : i32, i32
  }
  func.func @transform_8(%arg0: i32, %arg1: i32) -> (i32, i32) {
    %c0_i32 = arith.constant 0 : i32
    %c0_i32_0 = arith.constant 0 : i32
    %c0_i32_1 = arith.constant 0 : i32
    return %c0_i32, %c0_i32_0 : i32, i32
  }
  func.func @transform_9(%arg0: i32, %arg1: i32) -> (i32, i32, i32, i32) {
    %c0_i32 = arith.constant 0 : i32
    %c0_i32_0 = arith.constant 0 : i32
    %c0_i32_1 = arith.constant 0 : i32
    return %arg0, %arg1, %c0_i32, %c0_i32_0 : i32, i32, i32, i32
  }
}

</mosaic_0001>

<llo_original>
// kernel: tpu_custom_call.1
$region0: #{tpu_custom_call.1}
  #allocation0 [shape = 'u32[]', space=smem, size = 0x4, offset = 0x4, fixed_abs, tag = 'smem constant byte address 0x4 - core index']
  #allocation1 [shape = 'u32[144,128]{1,0:T(1,128)}', space=vmem, size = 0x12000, scoped, tag = 'internal scratch']
  %s0 = inlined_call_operand.hbm [shape: f32[2,2,8,32], index: 0, kind: input, shape index: {}]
  %s1 = inlined_call_operand.hbm [shape: f32[2,2,8,32], index: 1, kind: input, shape index: {}]
  %s2 = inlined_call_operand.hbm [shape: f32[2,2,8,32], index: 2, kind: input, shape index: {}]
  %s3 = inlined_call_operand.hbm [shape: bf16[32,32], index: 3, kind: input, shape index: {}]
  %s4 = inlined_call_operand.hbm [shape: bf16[32,32], index: 4, kind: input, shape index: {}]
  %s5 = inlined_call_operand.vmem [shape: bf16[32,32], index: 5, kind: input, shape index: {}]
  %s6 = inlined_call_operand.vmem [shape: f32[1,32], index: 6, kind: input, shape index: {}]
  %s7 = inlined_call_operand.vmem [shape: f32[1,32], index: 7, kind: input, shape index: {}]
  %s8 = inlined_call_operand.vmem [shape: f32[1,32], index: 8, kind: input, shape index: {}]
  %s9 = inlined_call_operand.hbm [shape: bf16[2,2,8,32], index: 9, kind: output, shape index: {}]
  %s10 = sld [smem:[#allocation0]]
  $region89: #{tpu_custom_call.1} parent=0
    _
  %s12 = ssub.s32 1, %s10
  %s13 = scalar_select 0, %s12, %s10
  $region1: #{tpu_custom_call.1} parent=0
    #allocation2 [shape = 'u8[16384]{0}', space=vmem, size = 0x4000, scoped, tag = 'input window, operand 0']
    #allocation3 [shape = 's32[2]{0}', space=sflag, size = 0x8, scoped, tag = 'scoped memory for tpu_custom_call.1']
    #allocation4 [shape = 's32[2]{0}', space=sflag, size = 0x8, scoped, tag = 'scoped memory for tpu_custom_call.1']
    #allocation5 [shape = 'u8[16384]{0}', space=vmem, size = 0x4000, scoped, tag = 'input window, operand 1']
    #allocation6 [shape = 's32[2]{0}', space=sflag, size = 0x8, scoped, tag = 'scoped memory for tpu_custom_call.1']
    #allocation7 [shape = 'u8[16384]{0}', space=vmem, size = 0x4000, scoped, tag = 'input window, operand 2']
    #allocation8 [shape = 'u8[8192]{0}', space=vmem, size = 0x2000, scoped, tag = 'input window, operand 3, single buffered']
    #allocation9 [shape = 's32[1]{0}', space=sflag, size = 0x4, scoped, tag = 'scoped memory for tpu_custom_call.1']
    #allocation10 [shape = 'u8[8192]{0}', space=vmem, size = 0x2000, scoped, tag = 'input window, operand 4, single buffered']
    #allocation11 [shape = 'u8[8192]{0}', space=vmem, size = 0x2000, scoped, tag = 'output window, operand 0']
    %14 = vsyncpa [#allocation3], 0
    %s15 = scalar_lea.sflag [#allocation3], 1
    %16 = vsyncpa %s15, 0
    %17 = vsyncpa [#allocation6], 0
    %s18 = scalar_lea.sflag [#allocation6], 1
    %19 = vsyncpa %s18, 0
    %20 = vsyncpa [#allocation9], 0
    %21 = vsyncpa [#allocation4], 0
    %s22 = scalar_lea.sflag [#allocation4], 1
    %23 = vsyncpa %s22, 0
    loop: start=0, step=1, limit=4
    $region2: #{tpu_custom_call.1} parent=1 // loop_pre_header
      _
    $region3: #{tpu_custom_call.1} parent=1 // loop_header
      %s25 = sphi 0, %s29
      %p26 = scmp.ge.s32.totalorder %s25, 4
      %s32 = sphi 0, %s44
      %s33 = sphi 0, %s40
      %s34 = sphi 0, %s32
      %s35 = sphi 0, %s33
      %s36 = sphi 0, %s34
      %s37 = sphi 0, %s35
      %s49 = sphi 0, %s51
      %s52 = sphi 0, %s49
      %s53 = sphi 0, %s52
      %s69 = sphi 0, %s53
      %s77 = sphi 0, %s79
      %s80 = sphi 0, %s77
      %s81 = sphi 0, %s80
      %s97 = sphi 0, %s81
      %s105 = sphi 0, %s107
      %s108 = sphi 0, %s105
      %s109 = sphi 0, %s108
      %s125 = sphi 0, %s109
      %s129 = sphi 0, %s129
      %s131 = sphi 0, %s129
      %s132 = sphi 0, %s131
      %s146 = sphi 0, %s132
      %s150 = sphi 0, %s150
      %s152 = sphi 0, %s150
      %s153 = sphi 0, %s152
      %s167 = sphi 0, %s153
      %s171 = sphi 0, %s171
      %s173 = sphi 0, %s171
      %s174 = sphi 0, %s173
      %s188 = sphi 0, %s174
      %s192 = sphi 0, %s192
      %s194 = sphi 0, %s192
      %s195 = sphi 0, %s194
      %s209 = sphi 0, %s195
      %s213 = sphi 0, %s213
      %s215 = sphi 0, %s213
      %s216 = sphi 0, %s215
      %s230 = sphi 0, %s216
      %s234 = sphi 0, %s234
      %s236 = sphi 0, %s234
      %s237 = sphi 0, %s236
      %s251 = sphi 0, %s237
      %s259 = sphi 0, %s261
      %s262 = sphi 0, %s259
      %s263 = sphi 0, %s262
      %s279 = sphi 0, %s263
    $region4: #{tpu_custom_call.1} parent=1 // loop_header_branch
      %28 = sbr.rel (%p26) target = $region8
    $region5: #{tpu_custom_call.1} parent=1 // loop_body
      %s30 = ssub.s32 %s25, 1
      %s31 = ssub.s32 %s25, 2
      %s38 = sadd.s32 1, %s33
      %p39 = scmp.ge.s32.totalorder %s38, 1
      %s40 = scalar_select %p39, 0, %s38
      %s41 = sadd.s32 1, %s32
      %s42 = scalar_select %p39, %s41, %s32
      %p43 = scmp.ge.s32.totalorder %s42, 2
      %s44 = scalar_select %p43, 0, %s42
      %s45 = ssub.s32 %s32, %s44
      %s46 = ssub.s32 %s33, %s40
      %s47 = sor.u32 %s45, %s46
      %p48 = scmp.eq.s32.totalorder %s47, 0
      %s50 = sadd.s32 %s49, 1
      %s51 = scalar_select %p48, %s49, %s50
      %p54 = pneg %p48
      %p55 = scmp.eq.s32.totalorder %s25, 1
      %p56 = por %p54, %p55
      %p57 = scmp.ne.s32.totalorder %s49, %s52
      %p58 = scmp.eq.s32.totalorder %s25, 0
      %p59 = por %p57, %p58
      %p60 = scmp.ne.s32.totalorder %s49, %s52
      %p61 = scmp.eq.s32.totalorder %s30, 1
      %p62 = por %p60, %p61
      %p63 = scmp.ne.s32.totalorder %s52, %s53
      %p64 = scmp.eq.s32.totalorder %s30, 0
      %p65 = por %p63, %p64
      %p66 = scmp.ne.s32.totalorder %s52, %s53
      %p67 = scmp.eq.s32.totalorder %s31, 1
      %p68 = por %p66, %p67
      %p70 = scmp.ne.s32.totalorder %s53, %s69
      %p71 = scmp.eq.s32.totalorder %s31, 0
      %p72 = por %p70, %p71
      %s73 = ssub.s32 %s32, %s44
      %s74 = ssub.s32 %s33, %s40
      %s75 = sor.u32 %s73, %s74
      %p76 = scmp.eq.s32.totalorder %s75, 0
      %s78 = sadd.s32 %s77, 1
      %s79 = scalar_select %p76, %s77, %s78
      %p82 = pneg %p76
      %p83 = scmp.eq.s32.totalorder %s25, 1
      %p84 = por %p82, %p83
      %p85 = scmp.ne.s32.totalorder %s77, %s80
      %p86 = scmp.eq.s32.totalorder %s25, 0
      %p87 = por %p85, %p86
      %p88 = scmp.ne.s32.totalorder %s77, %s80
      %p89 = scmp.eq.s32.totalorder %s30, 1
      %p90 = por %p88, %p89
      %p91 = scmp.ne.s32.totalorder %s80, %s81
      %p92 = scmp.eq.s32.totalorder %s30, 0
      %p93 = por %p91, %p92
      %p94 = scmp.ne.s32.totalorder %s80, %s81
      %p95 = scmp.eq.s32.totalorder %s31, 1
      %p96 = por %p94, %p95
      %p98 = scmp.ne.s32.totalorder %s81, %s97
      %p99 = scmp.eq.s32.totalorder %s31, 0
      %p100 = por %p98, %p99
      %s101 = ssub.s32 %s32, %s44
      %s102 = ssub.s32 %s33, %s40
      %s103 = sor.u32 %s101, %s102
      %p104 = scmp.eq.s32.totalorder %s103, 0
      %s106 = sadd.s32 %s105, 1
      %s107 = scalar_select %p104, %s105, %s106
      %p110 = pneg %p104
      %p111 = scmp.eq.s32.totalorder %s25, 1
      %p112 = por %p110, %p111
      %p113 = scmp.ne.s32.totalorder %s105, %s108
      %p114 = scmp.eq.s32.totalorder %s25, 0
      %p115 = por %p113, %p114
      %p116 = scmp.ne.s32.totalorder %s105, %s108
      %p117 = scmp.eq.s32.totalorder %s30, 1
      %p118 = por %p116, %p117
      %p119 = scmp.ne.s32.totalorder %s108, %s109
      %p120 = scmp.eq.s32.totalorder %s30, 0
      %p121 = por %p119, %p120
      %p122 = scmp.ne.s32.totalorder %s108, %s109
      %p123 = scmp.eq.s32.totalorder %s31, 1
      %p124 = por %p122, %p123
      %p126 = scmp.ne.s32.totalorder %s109, %s125
      %p127 = scmp.eq.s32.totalorder %s31, 0
      %p128 = por %p126, %p127
      %s130 = sadd.s32 %s129, 1
      %p133 = scmp.eq.s32.totalorder %s25, 1
      %p134 = scmp.ne.s32.totalorder %s129, %s131
      %p135 = scmp.eq.s32.totalorder %s25, 0
      %p136 = por %p134, %p135
      %p137 = scmp.ne.s32.totalorder %s129, %s131
      %p138 = scmp.eq.s32.totalorder %s30, 1
      %p139 = por %p137, %p138
      %p140 = scmp.ne.s32.totalorder %s131, %s132
      %p141 = scmp.eq.s32.totalorder %s30, 0
      %p142 = por %p140, %p141
      %p143 = scmp.ne.s32.totalorder %s131, %s132
      %p144 = scmp.eq.s32.totalorder %s31, 1
      %p145 = por %p143, %p144
      %p147 = scmp.ne.s32.totalorder %s132, %s146
      %p148 = scmp.eq.s32.totalorder %s31, 0
      %p149 = por %p147, %p148
      %s151 = sadd.s32 %s150, 1
      %p154 = scmp.eq.s32.totalorder %s25, 1
      %p155 = scmp.ne.s32.totalorder %s150, %s152
      %p156 = scmp.eq.s32.totalorder %s25, 0
      %p157 = por %p155, %p156
      %p158 = scmp.ne.s32.totalorder %s150, %s152
      %p159 = scmp.eq.s32.totalorder %s30, 1
      %p160 = por %p158, %p159
      %p161 = scmp.ne.s32.totalorder %s152, %s153
      %p162 = scmp.eq.s32.totalorder %s30, 0
      %p163 = por %p161, %p162
      %p164 = scmp.ne.s32.totalorder %s152, %s153
      %p165 = scmp.eq.s32.totalorder %s31, 1
      %p166 = por %p164, %p165
      %p168 = scmp.ne.s32.totalorder %s153, %s167
      %p169 = scmp.eq.s32.totalorder %s31, 0
      %p170 = por %p168, %p169
      %s172 = sadd.s32 %s171, 1
      %p175 = scmp.eq.s32.totalorder %s25, 1
      %p176 = scmp.ne.s32.totalorder %s171, %s173
      %p177 = scmp.eq.s32.totalorder %s25, 0
      %p178 = por %p176, %p177
      %p179 = scmp.ne.s32.totalorder %s171, %s173
      %p180 = scmp.eq.s32.totalorder %s30, 1
      %p181 = por %p179, %p180
      %p182 = scmp.ne.s32.totalorder %s173, %s174
      %p183 = scmp.eq.s32.totalorder %s30, 0
      %p184 = por %p182, %p183
      %p185 = scmp.ne.s32.totalorder %s173, %s174
      %p186 = scmp.eq.s32.totalorder %s31, 1
      %p187 = por %p185, %p186
      %p189 = scmp.ne.s32.totalorder %s174, %s188
      %p190 = scmp.eq.s32.totalorder %s31, 0
      %p191 = por %p189, %p190
      %s193 = sadd.s32 %s192, 1
      %p196 = scmp.eq.s32.totalorder %s25, 1
      %p197 = scmp.ne.s32.totalorder %s192, %s194
      %p198 = scmp.eq.s32.totalorder %s25, 0
      %p199 = por %p197, %p198
      %p200 = scmp.ne.s32.totalorder %s192, %s194
      %p201 = scmp.eq.s32.totalorder %s30, 1
      %p202 = por %p200, %p201
      %p203 = scmp.ne.s32.totalorder %s194, %s195
      %p204 = scmp.eq.s32.totalorder %s30, 0
      %p205 = por %p203, %p204
      %p206 = scmp.ne.s32.totalorder %s194, %s195
      %p207 = scmp.eq.s32.totalorder %s31, 1
      %p208 = por %p206, %p207
      %p210 = scmp.ne.s32.totalorder %s195, %s209
      %p211 = scmp.eq.s32.totalorder %s31, 0
      %p212 = por %p210, %p211
      %s214 = sadd.s32 %s213, 1
      %p217 = scmp.eq.s32.totalorder %s25, 1
      %p218 = scmp.ne.s32.totalorder %s213, %s215
      %p219 = scmp.eq.s32.totalorder %s25, 0
      %p220 = por %p218, %p219
      %p221 = scmp.ne.s32.totalorder %s213, %s215
      %p222 = scmp.eq.s32.totalorder %s30, 1
      %p223 = por %p221, %p222
      %p224 = scmp.ne.s32.totalorder %s215, %s216
      %p225 = scmp.eq.s32.totalorder %s30, 0
      %p226 = por %p224, %p225
      %p227 = scmp.ne.s32.totalorder %s215, %s216
      %p228 = scmp.eq.s32.totalorder %s31, 1
      %p229 = por %p227, %p228
      %p231 = scmp.ne.s32.totalorder %s216, %s230
      %p232 = scmp.eq.s32.totalorder %s31, 0
      %p233 = por %p231, %p232
      %s235 = sadd.s32 %s234, 1
      %p238 = scmp.eq.s32.totalorder %s25, 1
      %p239 = scmp.ne.s32.totalorder %s234, %s236
      %p240 = scmp.eq.s32.totalorder %s25, 0
      %p241 = por %p239, %p240
      %p242 = scmp.ne.s32.totalorder %s234, %s236
      %p243 = scmp.eq.s32.totalorder %s30, 1
      %p244 = por %p242, %p243
      %p245 = scmp.ne.s32.totalorder %s236, %s237
      %p246 = scmp.eq.s32.totalorder %s30, 0
      %p247 = por %p245, %p246
      %p248 = scmp.ne.s32.totalorder %s236, %s237
      %p249 = scmp.eq.s32.totalorder %s31, 1
      %p250 = por %p248, %p249
      %p252 = scmp.ne.s32.totalorder %s237, %s251
      %p253 = scmp.eq.s32.totalorder %s31, 0
      %p254 = por %p252, %p253
      %s255 = ssub.s32 %s32, %s44
      %s256 = ssub.s32 %s33, %s40
      %s257 = sor.u32 %s255, %s256
      %p258 = scmp.eq.s32.totalorder %s257, 0
      %s260 = sadd.s32 %s259, 1
      %s261 = scalar_select %p258, %s259, %s260
      %p264 = pneg %p258
      %p265 = scmp.eq.s32.totalorder %s25, 1
      %p266 = por %p264, %p265
      %p267 = scmp.ne.s32.totalorder %s259, %s262
      %p268 = scmp.eq.s32.totalorder %s25, 0
      %p269 = por %p267, %p268
      %p270 = scmp.ne.s32.totalorder %s259, %s262
      %p271 = scmp.eq.s32.totalorder %s30, 1
      %p272 = por %p270, %p271
      %p273 = scmp.ne.s32.totalorder %s262, %s263
      %p274 = scmp.eq.s32.totalorder %s30, 0
      %p275 = por %p273, %p274
      %p276 = scmp.ne.s32.totalorder %s262, %s263
      %p277 = scmp.eq.s32.totalorder %s31, 1
      %p278 = por %p276, %p277
      %p280 = scmp.ne.s32.totalorder %s263, %s279
      %p281 = scmp.eq.s32.totalorder %s31, 0
      %p282 = por %p280, %p281
      %p283 = scmp.le.s32.totalorder 1, %s25
      %p284 = scmp.lt.s32.totalorder %s25, 3
      %p285 = pnand %p283, %p284
      %p286 = pneg %p285
      // Predicated region
      $region9: #{tpu_custom_call.1} parent=5 // pred_check
        _
      $region10: #{tpu_custom_call.1} parent=5 // pred_check_branch
        %288 = sbr.rel (%p285) target = $region12
      $region11: #{tpu_custom_call.1} parent=5 // pred_region
        %s289 = ssub.s32 %s25, 1
        // Predicated region
        $region13: #{tpu_custom_call.1} parent=11 // pred_check
          %p290 = pneg %p142
        $region14: #{tpu_custom_call.1} parent=11 // pred_check_branch
          %292 = sbr.rel (%p290) target = $region16
        $region15: #{tpu_custom_call.1} parent=11 // pred_region
          %s294 = ssub.s32 256, 256
          %295 = vsyncadd [#allocation9], %s294
          %s296 = sshll.u32 [#allocation8], 4
          %s297 = int_to_ptr.vmem [resolvable:$true] %s296
          %302 = dma.hbm_to_vmem [thread:$0]  %s3, 256, %s297, [#allocation9], 64, 64, 4
        $region16: #{tpu_custom_call.1} parent=11 // pred_fallthru
          _
        // Predicated region
        $region17: #{tpu_custom_call.1} parent=11 // pred_check
          %p303 = pneg %p163
        $region18: #{tpu_custom_call.1} parent=11 // pred_check_branch
          %305 = sbr.rel (%p303) target = $region20
        $region19: #{tpu_custom_call.1} parent=11 // pred_region
          %s307 = ssub.s32 256, 256
          %308 = vsyncadd [#allocation9], %s307
          %s309 = sshll.u32 [#allocation10], 4
          %s310 = int_to_ptr.vmem [resolvable:$true] %s309
          %315 = dma.hbm_to_vmem [thread:$0]  %s4, 256, %s310, [#allocation9], 64, 64, 4
        $region20: #{tpu_custom_call.1} parent=11 // pred_fallthru
          _
        // Predicated region
        $region21: #{tpu_custom_call.1} parent=11 // pred_check
          %p316 = pneg %p184
        $region22: #{tpu_custom_call.1} parent=11 // pred_check_branch
          %318 = sbr.rel (%p316) target = $region24
        $region23: #{tpu_custom_call.1} parent=11 // pred_region
          _
        $region24: #{tpu_custom_call.1} parent=11 // pred_fallthru
          _
        // Predicated region
        $region25: #{tpu_custom_call.1} parent=11 // pred_check
          %p319 = pneg %p205
        $region26: #{tpu_custom_call.1} parent=11 // pred_check_branch
          %321 = sbr.rel (%p319) target = $region28
        $region27: #{tpu_custom_call.1} parent=11 // pred_region
          _
        $region28: #{tpu_custom_call.1} parent=11 // pred_fallthru
          _
        // Predicated region
        $region29: #{tpu_custom_call.1} parent=11 // pred_check
          %p322 = pneg %p226
        $region30: #{tpu_custom_call.1} parent=11 // pred_check_branch
          %324 = sbr.rel (%p322) target = $region32
        $region31: #{tpu_custom_call.1} parent=11 // pred_region
          _
        $region32: #{tpu_custom_call.1} parent=11 // pred_fallthru
          _
        // Predicated region
        $region33: #{tpu_custom_call.1} parent=11 // pred_check
          %p325 = pneg %p247
        $region34: #{tpu_custom_call.1} parent=11 // pred_check_branch
          %327 = sbr.rel (%p325) target = $region36
        $region35: #{tpu_custom_call.1} parent=11 // pred_region
          _
        $region36: #{tpu_custom_call.1} parent=11 // pred_fallthru
          _
      $region12: #{tpu_custom_call.1} parent=5 // pred_fallthru
        _
      %p328 = scmp.lt.s32.totalorder %s25, 2
      // Predicated region
      $region37: #{tpu_custom_call.1} parent=5 // pred_check
        %p329 = pneg %p328
      $region38: #{tpu_custom_call.1} parent=5 // pred_check_branch
        %331 = sbr.rel (%p329) target = $region40
      $region39: #{tpu_custom_call.1} parent=5 // pred_region
        // Predicated region
        $region41: #{tpu_custom_call.1} parent=39 // pred_check
          %p332 = pneg %p59
        $region42: #{tpu_custom_call.1} parent=39 // pred_check_branch
          %334 = sbr.rel (%p332) target = $region44
        $region43: #{tpu_custom_call.1} parent=39 // pred_region
          %s335 = sand.u32 %s49, 1
          %s336 = scalar_lea.sflag [#allocation3], %s335
          %s337 = sand.u32 %s49, 1
          %s338 = smul.addr %s337, 16
          %s339 = scalar_lea.vmem [#allocation2], %s338
          %s340 = smul.u32 2, %s33
          %s342 = ssub.s32 256, 256
          %343 = vsyncadd %s336, %s342
          %s344 = smul.addr %s32, 2
          %s345 = sadd.s32 %s340, %s344
          %s346 = smul.addr %s345, 128
          %s347 = scalar_lea.hbm %s0, %s346
          %s348 = sshll.u32 %s339, 4
          %s349 = int_to_ptr.vmem [resolvable:$true] %s348
          %354 = dma.hbm_to_vmem [thread:$0]  %s347, 256, %s349, %s336, 128, 128, 8
        $region44: #{tpu_custom_call.1} parent=39 // pred_fallthru
          _
        // Predicated region
        $region45: #{tpu_custom_call.1} parent=39 // pred_check
          %p355 = pneg %p87
        $region46: #{tpu_custom_call.1} parent=39 // pred_check_branch
          %357 = sbr.rel (%p355) target = $region48
        $region47: #{tpu_custom_call.1} parent=39 // pred_region
          %s358 = sand.u32 %s25, 1
          %s359 = scalar_lea.sflag [#allocation6], %s358
          %s360 = sand.u32 %s77, 1
          %s361 = smul.addr %s360, 16
          %s362 = scalar_lea.vmem [#allocation5], %s361
          %s363 = smul.u32 2, %s33
          %s365 = ssub.s32 256, 256
          %366 = vsyncadd %s359, %s365
          %s367 = smul.addr %s32, 2
          %s368 = sadd.s32 %s363, %s367
          %s369 = smul.addr %s368, 128
          %s370 = scalar_lea.hbm %s1, %s369
          %s371 = sshll.u32 %s362, 4
          %s372 = int_to_ptr.vmem [resolvable:$true] %s371
          %377 = dma.hbm_to_vmem [thread:$0]  %s370, 256, %s372, %s359, 128, 128, 8
        $region48: #{tpu_custom_call.1} parent=39 // pred_fallthru
          _
        // Predicated region
        $region49: #{tpu_custom_call.1} parent=39 // pred_check
          %p378 = pneg %p115
        $region50: #{tpu_custom_call.1} parent=39 // pred_check_branch
          %380 = sbr.rel (%p378) target = $region52
        $region51: #{tpu_custom_call.1} parent=39 // pred_region
          %s381 = sand.u32 %s25, 1
          %s382 = scalar_lea.sflag [#allocation6], %s381
          %s383 = sand.u32 %s105, 1
          %s384 = smul.addr %s383, 16
          %s385 = scalar_lea.vmem [#allocation7], %s384
          %s386 = smul.u32 2, %s33
          %s388 = ssub.s32 256, 256
          %389 = vsyncadd %s382, %s388
          %s390 = smul.addr %s32, 2
          %s391 = sadd.s32 %s386, %s390
          %s392 = smul.addr %s391, 128
          %s393 = scalar_lea.hbm %s2, %s392
          %s394 = sshll.u32 %s385, 4
          %s395 = int_to_ptr.vmem [resolvable:$true] %s394
          %400 = dma.hbm_to_vmem [thread:$0]  %s393, 256, %s395, %s382, 128, 128, 8
        $region52: #{tpu_custom_call.1} parent=39 // pred_fallthru
          _
      $region40: #{tpu_custom_call.1} parent=5 // pred_fallthru
        _
      %p401 = scmp.le.s32.totalorder 1, %s25
      %p402 = scmp.lt.s32.totalorder %s25, 3
      %p403 = pnand %p401, %p402
      %p404 = pneg %p403
      // Predicated region
      $region53: #{tpu_custom_call.1} parent=5 // pred_check
        _
      $region54: #{tpu_custom_call.1} parent=5 // pred_check_branch
        %406 = sbr.rel (%p403) target = $region56
      $region55: #{tpu_custom_call.1} parent=5 // pred_region
        %s407 = ssub.s32 %s25, 1
        %s408 = sand.u32 %s52, 1
        %s409 = scalar_lea.sflag [#allocation3], %s408
        %s410 = sand.u32 %s52, 1
        %s411 = smul.addr %s410, 16
        %s412 = scalar_lea.vmem [#allocation2], %s411
        // Predicated region
        $region57: #{tpu_custom_call.1} parent=55 // pred_check
          %p413 = pneg %p65
        $region58: #{tpu_custom_call.1} parent=55 // pred_check_branch
          %415 = sbr.rel (%p413) target = $region60
        $region59: #{tpu_custom_call.1} parent=55 // pred_region
          %416 = dma.done %s409, 256
        $region60: #{tpu_custom_call.1} parent=55 // pred_fallthru
          _
        %s417 = sand.u32 %s30, 1
        %s418 = scalar_lea.sflag [#allocation6], %s417
        %s419 = sand.u32 %s80, 1
        %s420 = smul.addr %s419, 16
        %s421 = scalar_lea.vmem [#allocation5], %s420
        // Predicated region
        $region61: #{tpu_custom_call.1} parent=55 // pred_check
          %p422 = pneg %p93
        $region62: #{tpu_custom_call.1} parent=55 // pred_check_branch
          %424 = sbr.rel (%p422) target = $region64
        $region63: #{tpu_custom_call.1} parent=55 // pred_region
          %425 = dma.done %s418, 256
        $region64: #{tpu_custom_call.1} parent=55 // pred_fallthru
          _
        %s426 = sand.u32 %s30, 1
        %s427 = scalar_lea.sflag [#allocation6], %s426
        %s428 = sand.u32 %s108, 1
        %s429 = smul.addr %s428, 16
        %s430 = scalar_lea.vmem [#allocation7], %s429
        // Predicated region
        $region65: #{tpu_custom_call.1} parent=55 // pred_check
          %p431 = pneg %p121
        $region66: #{tpu_custom_call.1} parent=55 // pred_check_branch
          %433 = sbr.rel (%p431) target = $region68
        $region67: #{tpu_custom_call.1} parent=55 // pred_region
          %434 = dma.done %s427, 256
        $region68: #{tpu_custom_call.1} parent=55 // pred_fallthru
          _
        // Predicated region
        $region69: #{tpu_custom_call.1} parent=55 // pred_check
          %p435 = pneg %p142
        $region70: #{tpu_custom_call.1} parent=55 // pred_check_branch
          %437 = sbr.rel (%p435) target = $region72
        $region71: #{tpu_custom_call.1} parent=55 // pred_region
          %438 = dma.done [#allocation9], 256
        $region72: #{tpu_custom_call.1} parent=55 // pred_fallthru
          _
        // Predicated region
        $region73: #{tpu_custom_call.1} parent=55 // pred_check
          %p439 = pneg %p163
        $region74: #{tpu_custom_call.1} parent=55 // pred_check_branch
          %441 = sbr.rel (%p439) target = $region76
        $region75: #{tpu_custom_call.1} parent=55 // pred_region
          %442 = dma.done [#allocation9], 256
        $region76: #{tpu_custom_call.1} parent=55 // pred_fallthru
          _
        %s443 = sand.u32 %s52, 1
        %s444 = scalar_lea.sflag [#allocation3], %s443
        %s445 = sand.u32 %s52, 1
        %s446 = smul.addr %s445, 16
        %s447 = scalar_lea.vmem [#allocation2], %s446
        %p448 = pneg %p65
        %p449 = pneg %p62
        %s450 = sand.u32 %s30, 1
        %s451 = scalar_lea.sflag [#allocation6], %s450
        %s452 = sand.u32 %s80, 1
        %s453 = smul.addr %s452, 16
        %s454 = scalar_lea.vmem [#allocation5], %s453
        %p455 = pneg %p93
        %p456 = pneg %p90
        %s457 = sand.u32 %s30, 1
        %s458 = scalar_lea.sflag [#allocation6], %s457
        %s459 = sand.u32 %s108, 1
        %s460 = smul.addr %s459, 16
        %s461 = scalar_lea.vmem [#allocation7], %s460
        %p462 = pneg %p121
        %p463 = pneg %p118
        %p464 = pneg %p142
        %p465 = pneg %p139
        %p466 = pneg %p163
        %p467 = pneg %p160
        %p468 = pneg %p184
        %p469 = pneg %p181
        %p470 = pneg %p205
        %p471 = pneg %p202
        %p472 = pneg %p226
        %p473 = pneg %p223
        %p474 = pneg %p247
        %p475 = pneg %p244
        %p476 = pneg %p275
        %p477 = pneg %p272
        %s478 = sand.u32 %s262, 1
        %s479 = scalar_lea.sflag [#allocation4], %s478
        %s480 = sand.u32 %s262, 1
        %s481 = smul.addr %s480, 8
        %s482 = scalar_lea.vmem [#allocation11], %s481
        %s483 = smul.u32 2, %s35
        %s484 = smul.u32 2, %s35
        %s485 = smul.u32 2, %s35
        %s486 = smul.u32 2, %s35
        %v488 = vld [vmem:[%s412] sm:$0xff]
        %v489 = vld [vmem:[%s412 + $0x8] sm:$0xff]
        %v490 = vpack.c.bf16 %v489, %v488
        %v491 = vld [vmem:[%s421] sm:$0xff]
        %v492 = vld [vmem:[%s421 + $0x8] sm:$0xff]
        %v493 = vpack.c.bf16 %v492, %v491
        %v494 = vld [vmem:[%s430] sm:$0xff]
        %v495 = vld [vmem:[%s430 + $0x8] sm:$0xff]
        %v496 = vpack.c.bf16 %v495, %v494
        %v497 = vld [vmem:[#allocation8] sm:$0xf]
        %v498 = vld [vmem:[#allocation8 + $0x4] sm:$0xf]
        %v499 = vld [vmem:[#allocation8 + $0x8] sm:$0xf]
        %v500 = vld [vmem:[#allocation8 + $0xc] sm:$0xf]
        %v501 = vld [vmem:[%s6] sm:$0x1]
        %v503 = vlaneseq
        %v504 = vshrl.u32 %v503, 7
        %v505 = vsub.s32 0, %v504
        %v506 = vrot.slane %v501, %v505
        %v512 = vunpack.c.l.b16 %v497
        %v513 = vunpack.c.l.b16 %v498
        %v514 = vunpack.c.l.b16 %v499
        %v515 = vunpack.c.l.b16 %v500
        %v516 = vpack.c.b16 %v513, %v512
        %v517 = vpack.c.b16 %v515, %v514
        %vm520 = vcmask 261120
        %v522 = vsel %vm520, %v490, 0
        %524 = vmatprep.subr.bf16.mxu0 0
        %525 = vmatpush1.bf16.msra.mxu0 %v516
        %526 = vmatprep.subr.bf16.mxu0 0
        %527 = vmatpush1.bf16.msra.mxu0 %v517
        %528 = vmatprep.subr.bf16.mxu0 0
        %529 = vmatpush1.bf16.msra.mxu0 0
        %530 = vmatprep.subr.bf16.mxu0 0
        %531 = vmatpush1.bf16.msra.mxu0 0
        %532 = vmatprep.subr.bf16.mxu0 0
        %533 = vmatpush1.bf16.msra.mxu0 0
        %534 = vmatprep.subr.bf16.mxu0 0
        %535 = vmatpush1.bf16.msra.mxu0 0
        %536 = vmatprep.subr.bf16.mxu0 0
        %537 = vmatpush1.bf16.msra.mxu0 0
        %538 = vmatprep.subr.bf16.mxu0 0
        %539 = vmatpush1.bf16.msra.mxu0 0
        %540 = vmatprep.subr.bf16.mxu0 0
        %541 = vmatpush1.bf16.msra.mxu0 0
        %542 = vmatprep.subr.bf16.mxu0 0
        %543 = vmatpush1.bf16.msra.mxu0 0
        %544 = vmatprep.subr.bf16.mxu0 0
        %545 = vmatpush1.bf16.msra.mxu0 0
        %546 = vmatprep.subr.bf16.mxu0 0
        %547 = vmatpush1.bf16.msra.mxu0 0
        %548 = vmatprep.subr.bf16.mxu0 0
        %549 = vmatpush1.bf16.msra.mxu0 0
        %550 = vmatprep.subr.bf16.mxu0 0
        %551 = vmatpush1.bf16.msra.mxu0 0
        %552 = vmatprep.subr.bf16.mxu0 0
        %553 = vmatpush1.bf16.msra.mxu0 0
        %554 = vmatprep.subr.bf16.mxu0 0
        %555 = vmatpush1.bf16.msra.mxu0 0
        %556 = vmatprep.mubr.bf16.mxu0 0
        %557 = vmatmul.mubr.bf16.gmra.mrb[0].mxu0 %v522
        %v558 = vpop.f32.mrb[0].mxu0
        %v559 = vadd.f32 %v506, %v558
        %v560 = vpop.f32.mrb[0].mxu0
        %v561 = vpop.f32.mrb[0].mxu0
        %v562 = vadd.f32 %v506, %v561
        %v563 = vpop.f32.mrb[0].mxu0
        %564 = vdwg.mxu0
        %v565 = vpack.c.bf16 %v562, %v559
        %v567 = vunpack.c.l.b16 %v565
        %v568 = vunpack.c.h.b16 %v565
        %v569 = vpack.c.b16 %v567, %v567
        %v570 = vpack.c.b16 %v568, %v568
        %v571 = vld [vmem:[#allocation10] sm:$0xf]
        %v572 = vld [vmem:[#allocation10 + $0x4] sm:$0xf]
        %v573 = vld [vmem:[#allocation10 + $0x8] sm:$0xf]
        %v574 = vld [vmem:[#allocation10 + $0xc] sm:$0xf]
        %v575 = vld [vmem:[%s7] sm:$0x1]
        %v577 = vlaneseq
        %v578 = vshrl.u32 %v577, 7
        %v579 = vsub.s32 0, %v578
        %v580 = vrot.slane %v575, %v579
        %v586 = vunpack.c.l.b16 %v571
        %v587 = vunpack.c.l.b16 %v572
        %v588 = vunpack.c.l.b16 %v573
        %v589 = vunpack.c.l.b16 %v574
        %v590 = vpack.c.b16 %v587, %v586
        %v591 = vpack.c.b16 %v589, %v588
        %v595 = vsel %vm520, %v493, 0
        %597 = vmatprep.subr.bf16.mxu0 0
        %598 = vmatpush1.bf16.msra.mxu0 %v590
        %599 = vmatprep.subr.bf16.mxu0 0
        %600 = vmatpush1.bf16.msra.mxu0 %v591
        %601 = vmatprep.subr.bf16.mxu0 0
        %602 = vmatpush1.bf16.msra.mxu0 0
        %603 = vmatprep.subr.bf16.mxu0 0
        %604 = vmatpush1.bf16.msra.mxu0 0
        %605 = vmatprep.subr.bf16.mxu0 0
        %606 = vmatpush1.bf16.msra.mxu0 0
        %607 = vmatprep.subr.bf16.mxu0 0
        %608 = vmatpush1.bf16.msra.mxu0 0
        %609 = vmatprep.subr.bf16.mxu0 0
        %610 = vmatpush1.bf16.msra.mxu0 0
        %611 = vmatprep.subr.bf16.mxu0 0
        %612 = vmatpush1.bf16.msra.mxu0 0
        %613 = vmatprep.subr.bf16.mxu0 0
        %614 = vmatpush1.bf16.msra.mxu0 0
        %615 = vmatprep.subr.bf16.mxu0 0
        %616 = vmatpush1.bf16.msra.mxu0 0
        %617 = vmatprep.subr.bf16.mxu0 0
        %618 = vmatpush1.bf16.msra.mxu0 0
        %619 = vmatprep.subr.bf16.mxu0 0
        %620 = vmatpush1.bf16.msra.mxu0 0
        %621 = vmatprep.subr.bf16.mxu0 0
        %622 = vmatpush1.bf16.msra.mxu0 0
        %623 = vmatprep.subr.bf16.mxu0 0
        %624 = vmatpush1.bf16.msra.mxu0 0
        %625 = vmatprep.subr.bf16.mxu0 0
        %626 = vmatpush1.bf16.msra.mxu0 0
        %627 = vmatprep.subr.bf16.mxu0 0
        %628 = vmatpush1.bf16.msra.mxu0 0
        %629 = vmatprep.mubr.bf16.mxu0 0
        %630 = vmatmul.mubr.bf16.gmra.mrb[0].mxu0 %v595
        %v631 = vpop.f32.mrb[0].mxu0
        %v632 = vadd.f32 %v580, %v631
        %v633 = vpop.f32.mrb[0].mxu0
        %v634 = vpop.f32.mrb[0].mxu0
        %v635 = vadd.f32 %v580, %v634
        %v636 = vpop.f32.mrb[0].mxu0
        %637 = vdwg.mxu0
        %v638 = vpack.c.bf16 %v635, %v632
        %v640 = vunpack.c.l.b16 %v638
        %v641 = vunpack.c.h.b16 %v638
        %v642 = vpack.c.b16 %v640, %v640
        %v643 = vpack.c.b16 %v641, %v641
        %v644 = vld [vmem:[%s5] sm:$0xf]
        %v645 = vld [vmem:[%s5 + $0x4] sm:$0xf]
        %v646 = vld [vmem:[%s5 + $0x8] sm:$0xf]
        %v647 = vld [vmem:[%s5 + $0xc] sm:$0xf]
        %v648 = vld [vmem:[%s8] sm:$0x1]
        %v650 = vlaneseq
        %v651 = vshrl.u32 %v650, 7
        %v652 = vsub.s32 0, %v651
        %v653 = vrot.slane %v648, %v652
        %v659 = vunpack.c.l.b16 %v644
        %v660 = vunpack.c.l.b16 %v645
        %v661 = vunpack.c.l.b16 %v646
        %v662 = vunpack.c.l.b16 %v647
        %v663 = vpack.c.b16 %v660, %v659
        %v664 = vpack.c.b16 %v662, %v661
        %v668 = vsel %vm520, %v496, 0
        %670 = vmatprep.subr.bf16.mxu0 0
        %671 = vmatpush1.bf16.msra.mxu0 %v663
        %672 = vmatprep.subr.bf16.mxu0 0
        %673 = vmatpush1.bf16.msra.mxu0 %v664
        %674 = vmatprep.subr.bf16.mxu0 0
        %675 = vmatpush1.bf16.msra.mxu0 0
        %676 = vmatprep.subr.bf16.mxu0 0
        %677 = vmatpush1.bf16.msra.mxu0 0
        %678 = vmatprep.subr.bf16.mxu0 0
        %679 = vmatpush1.bf16.msra.mxu0 0
        %680 = vmatprep.subr.bf16.mxu0 0
        %681 = vmatpush1.bf16.msra.mxu0 0
        %682 = vmatprep.subr.bf16.mxu0 0
        %683 = vmatpush1.bf16.msra.mxu0 0
        %684 = vmatprep.subr.bf16.mxu0 0
        %685 = vmatpush1.bf16.msra.mxu0 0
        %686 = vmatprep.subr.bf16.mxu0 0
        %687 = vmatpush1.bf16.msra.mxu0 0
        %688 = vmatprep.subr.bf16.mxu0 0
        %689 = vmatpush1.bf16.msra.mxu0 0
        %690 = vmatprep.subr.bf16.mxu0 0
        %691 = vmatpush1.bf16.msra.mxu0 0
        %692 = vmatprep.subr.bf16.mxu0 0
        %693 = vmatpush1.bf16.msra.mxu0 0
        %694 = vmatprep.subr.bf16.mxu0 0
        %695 = vmatpush1.bf16.msra.mxu0 0
        %696 = vmatprep.subr.bf16.mxu0 0
        %697 = vmatpush1.bf16.msra.mxu0 0
        %698 = vmatprep.subr.bf16.mxu0 0
        %699 = vmatpush1.bf16.msra.mxu0 0
        %700 = vmatprep.subr.bf16.mxu0 0
        %701 = vmatpush1.bf16.msra.mxu0 0
        %702 = vmatprep.mubr.bf16.mxu0 0
        %703 = vmatmul.mubr.bf16.gmra.mrb[0].mxu0 %v668
        %v704 = vpop.f32.mrb[0].mxu0
        %v705 = vadd.f32 %v653, %v704
        %v706 = vpop.f32.mrb[0].mxu0
        %v707 = vpop.f32.mrb[0].mxu0
        %v708 = vadd.f32 %v653, %v707
        %v709 = vpop.f32.mrb[0].mxu0
        %710 = vdwg.mxu0
        %v711 = vpack.c.bf16 %v708, %v705
        %v713 = vunpack.c.l.b16 %v711
        %v714 = vunpack.c.h.b16 %v711
        %v715 = vpack.c.b16 %v713, %v713
        %v716 = vpack.c.b16 %v714, %v714
        %vm717 = vcmask 64512
        %v719 = vsel %vm717, %v569, 0
        %v722 = vsel %vm717, %v642, 0
        %724 = vmatprep.subr.bf16.mxu0 0
        %725 = vmatpush1.bf16.xpose.msra.mxu0 %v722
        %726 = vmatprep.subr.bf16.mxu0 0
        %727 = vmatpush1.bf16.xpose.msra.mxu0 0
        %728 = vmatprep.subr.bf16.mxu0 0
        %729 = vmatpush1.bf16.xpose.msra.mxu0 0
        %730 = vmatprep.subr.bf16.mxu0 0
        %731 = vmatpush1.bf16.xpose.msra.mxu0 0
        %732 = vmatprep.subr.bf16.mxu0 0
        %733 = vmatpush1.bf16.xpose.msra.mxu0 0
        %734 = vmatprep.subr.bf16.mxu0 0
        %735 = vmatpush1.bf16.xpose.msra.mxu0 0
        %736 = vmatprep.subr.bf16.mxu0 0
        %737 = vmatpush1.bf16.xpose.msra.mxu0 0
        %738 = vmatprep.subr.bf16.mxu0 0
        %739 = vmatpush1.bf16.xpose.msra.mxu0 0
        %740 = vmatprep.subr.bf16.mxu0 0
        %741 = vmatpush1.bf16.xpose.msra.mxu0 0
        %742 = vmatprep.subr.bf16.mxu0 0
        %743 = vmatpush1.bf16.xpose.msra.mxu0 0
        %744 = vmatprep.subr.bf16.mxu0 0
        %745 = vmatpush1.bf16.xpose.msra.mxu0 0
        %746 = vmatprep.subr.bf16.mxu0 0
        %747 = vmatpush1.bf16.xpose.msra.mxu0 0
        %748 = vmatprep.subr.bf16.mxu0 0
        %749 = vmatpush1.bf16.xpose.msra.mxu0 0
        %750 = vmatprep.subr.bf16.mxu0 0
        %751 = vmatpush1.bf16.xpose.msra.mxu0 0
        %752 = vmatprep.subr.bf16.mxu0 0
        %753 = vmatpush1.bf16.xpose.msra.mxu0 0
        %754 = vmatprep.subr.bf16.mxu0 0
        %755 = vmatpush1.bf16.xpose.msra.mxu0 0
        %756 = vmatprep.mubr.bf16.mxu0 0
        %757 = vmatmul.mubr.bf16.gmra.mrb[0].mxu0 %v719
        %v758 = vpop.f32.mrb[0].mxu0
        %v759 = vadd.f32 0.0, %v758
        %v760 = vpop.f32.mrb[0].mxu0
        %v761 = vpop.f32.mrb[0].mxu0
        %v762 = vpop.f32.mrb[0].mxu0
        %763 = vdwg.mxu0
        %v765 = vsel %vm717, %v570, 0
        %v768 = vsel %vm717, %v643, 0
        %770 = vmatprep.subr.bf16.mxu0 0
        %771 = vmatpush1.bf16.xpose.msra.mxu0 %v768
        %772 = vmatprep.subr.bf16.mxu0 0
        %773 = vmatpush1.bf16.xpose.msra.mxu0 0
        %774 = vmatprep.subr.bf16.mxu0 0
        %775 = vmatpush1.bf16.xpose.msra.mxu0 0
        %776 = vmatprep.subr.bf16.mxu0 0
        %777 = vmatpush1.bf16.xpose.msra.mxu0 0
        %778 = vmatprep.subr.bf16.mxu0 0
        %779 = vmatpush1.bf16.xpose.msra.mxu0 0
        %780 = vmatprep.subr.bf16.mxu0 0
        %781 = vmatpush1.bf16.xpose.msra.mxu0 0
        %782 = vmatprep.subr.bf16.mxu0 0
        %783 = vmatpush1.bf16.xpose.msra.mxu0 0
        %784 = vmatprep.subr.bf16.mxu0 0
        %785 = vmatpush1.bf16.xpose.msra.mxu0 0
        %786 = vmatprep.subr.bf16.mxu0 0
        %787 = vmatpush1.bf16.xpose.msra.mxu0 0
        %788 = vmatprep.subr.bf16.mxu0 0
        %789 = vmatpush1.bf16.xpose.msra.mxu0 0
        %790 = vmatprep.subr.bf16.mxu0 0
        %791 = vmatpush1.bf16.xpose.msra.mxu0 0
        %792 = vmatprep.subr.bf16.mxu0 0
        %793 = vmatpush1.bf16.xpose.msra.mxu0 0
        %794 = vmatprep.subr.bf16.mxu0 0
        %795 = vmatpush1.bf16.xpose.msra.mxu0 0
        %796 = vmatprep.subr.bf16.mxu0 0
        %797 = vmatpush1.bf16.xpose.msra.mxu0 0
        %798 = vmatprep.subr.bf16.mxu0 0
        %799 = vmatpush1.bf16.xpose.msra.mxu0 0
        %800 = vmatprep.subr.bf16.mxu0 0
        %801 = vmatpush1.bf16.xpose.msra.mxu0 0
        %802 = vmatprep.mubr.bf16.mxu0 0
        %803 = vmatmul.mubr.bf16.gmra.mrb[0].mxu0 %v765
        %v804 = vpop.f32.mrb[0].mxu0
        %v805 = vadd.f32 0.0, %v804
        %v806 = vpop.f32.mrb[0].mxu0
        %v807 = vpop.f32.mrb[0].mxu0
        %v808 = vpop.f32.mrb[0].mxu0
        %809 = vdwg.mxu0
        %v810 = vsel %vm717, %v759, -inf
        %811 = vmax.xlane.f32.xlu0 %v810
        %v812 = vpop.xlane.xlu0 %811
        %v813 = vsel %vm717, %v805, -inf
        %814 = vmax.xlane.f32.xlu0 %v813
        %v815 = vpop.xlane.xlu0 %814
        %v816 = vsub.f32 %v759, %v812
        %v817 = vsub.f32 %v805, %v815
        %v818 = vmul.f32 %v816, 1.442695
        %v819 = vpow.pop %v818
        %v820 = vmul.f32 %v817, 1.442695
        %v821 = vpow.pop %v820
        %v822 = vsel %vm717, %v819, 0.0
        %823 = vadd.xlane.f32.xlu0 %v822
        %v824 = vpop.xlane.xlu0 %823
        %v825 = vsel %vm717, %v821, 0.0
        %826 = vadd.xlane.f32.xlu0 %v825
        %v827 = vpop.xlane.xlu0 %826
        %v828 = vrcp.pop %v824
        %v829 = vrcp.pop %v827
        %v830 = vpack.c.bf16 %v819, %v819
        %v831 = vpack.c.bf16 %v821, %v821
        %v833 = vsel %vm717, %v830, 0
        %vm835 = vcmask 1043456
        %v837 = vsel %vm835, %v715, 0
        %839 = vmatprep.subr.bf16.mxu0 0
        %840 = vmatpush1.bf16.msra.mxu0 %v837
        %841 = vmatprep.subr.bf16.mxu0 0
        %842 = vmatpush1.bf16.msra.mxu0 0
        %843 = vmatprep.subr.bf16.mxu0 0
        %844 = vmatpush1.bf16.msra.mxu0 0
        %845 = vmatprep.subr.bf16.mxu0 0
        %846 = vmatpush1.bf16.msra.mxu0 0
        %847 = vmatprep.subr.bf16.mxu0 0
        %848 = vmatpush1.bf16.msra.mxu0 0
        %849 = vmatprep.subr.bf16.mxu0 0
        %850 = vmatpush1.bf16.msra.mxu0 0
        %851 = vmatprep.subr.bf16.mxu0 0
        %852 = vmatpush1.bf16.msra.mxu0 0
        %853 = vmatprep.subr.bf16.mxu0 0
        %854 = vmatpush1.bf16.msra.mxu0 0
        %855 = vmatprep.subr.bf16.mxu0 0
        %856 = vmatpush1.bf16.msra.mxu0 0
        %857 = vmatprep.subr.bf16.mxu0 0
        %858 = vmatpush1.bf16.msra.mxu0 0
        %859 = vmatprep.subr.bf16.mxu0 0
        %860 = vmatpush1.bf16.msra.mxu0 0
        %861 = vmatprep.subr.bf16.mxu0 0
        %862 = vmatpush1.bf16.msra.mxu0 0
        %863 = vmatprep.subr.bf16.mxu0 0
        %864 = vmatpush1.bf16.msra.mxu0 0
        %865 = vmatprep.subr.bf16.mxu0 0
        %866 = vmatpush1.bf16.msra.mxu0 0
        %867 = vmatprep.subr.bf16.mxu0 0
        %868 = vmatpush1.bf16.msra.mxu0 0
        %869 = vmatprep.subr.bf16.mxu0 0
        %870 = vmatpush1.bf16.msra.mxu0 0
        %871 = vmatprep.mubr.bf16.mxu0 0
        %872 = vmatmul.mubr.bf16.gmra.mrb[0].mxu0 %v833
        %v873 = vpop.f32.mrb[0].mxu0
        %v874 = vadd.f32 0.0, %v873
        %v875 = vpop.f32.mrb[0].mxu0
        %v876 = vpop.f32.mrb[0].mxu0
        %v877 = vpop.f32.mrb[0].mxu0
        %878 = vdwg.mxu0
        %v880 = vsel %vm717, %v831, 0
        %v883 = vsel %vm835, %v716, 0
        %885 = vmatprep.subr.bf16.mxu0 0
        %886 = vmatpush1.bf16.msra.mxu0 %v883
        %887 = vmatprep.subr.bf16.mxu0 0
        %888 = vmatpush1.bf16.msra.mxu0 0
        %889 = vmatprep.subr.bf16.mxu0 0
        %890 = vmatpush1.bf16.msra.mxu0 0
        %891 = vmatprep.subr.bf16.mxu0 0
        %892 = vmatpush1.bf16.msra.mxu0 0
        %893 = vmatprep.subr.bf16.mxu0 0
        %894 = vmatpush1.bf16.msra.mxu0 0
        %895 = vmatprep.subr.bf16.mxu0 0
        %896 = vmatpush1.bf16.msra.mxu0 0
        %897 = vmatprep.subr.bf16.mxu0 0
        %898 = vmatpush1.bf16.msra.mxu0 0
        %899 = vmatprep.subr.bf16.mxu0 0
        %900 = vmatpush1.bf16.msra.mxu0 0
        %901 = vmatprep.subr.bf16.mxu0 0
        %902 = vmatpush1.bf16.msra.mxu0 0
        %903 = vmatprep.subr.bf16.mxu0 0
        %904 = vmatpush1.bf16.msra.mxu0 0
        %905 = vmatprep.subr.bf16.mxu0 0
        %906 = vmatpush1.bf16.msra.mxu0 0
        %907 = vmatprep.subr.bf16.mxu0 0
        %908 = vmatpush1.bf16.msra.mxu0 0
        %909 = vmatprep.subr.bf16.mxu0 0
        %910 = vmatpush1.bf16.msra.mxu0 0
        %911 = vmatprep.subr.bf16.mxu0 0
        %912 = vmatpush1.bf16.msra.mxu0 0
        %913 = vmatprep.subr.bf16.mxu0 0
        %914 = vmatpush1.bf16.msra.mxu0 0
        %915 = vmatprep.subr.bf16.mxu0 0
        %916 = vmatpush1.bf16.msra.mxu0 0
        %917 = vmatprep.mubr.bf16.mxu0 0
        %918 = vmatmul.mubr.bf16.gmra.mrb[0].mxu0 %v880
        %v919 = vpop.f32.mrb[0].mxu0
        %v920 = vadd.f32 0.0, %v919
        %v921 = vpop.f32.mrb[0].mxu0
        %v922 = vpop.f32.mrb[0].mxu0
        %v923 = vpop.f32.mrb[0].mxu0
        %924 = vdwg.mxu0
        %v925 = vmul.f32 %v874, %v828
        %v926 = vmul.f32 %v920, %v829
        %927 = vrot.lane.b32.xlu0 %v569, 120
        %v928 = vpop.permute.xlu0 %927
        %929 = vrot.lane.b32.xlu0 %v642, 120
        %v930 = vpop.permute.xlu0 %929
        %v932 = vsel %vm717, %v928, 0
        %v935 = vsel %vm717, %v930, 0
        %937 = vmatprep.subr.bf16.mxu0 0
        %938 = vmatpush1.bf16.xpose.msra.mxu0 %v935
        %939 = vmatprep.subr.bf16.mxu0 0
        %940 = vmatpush1.bf16.xpose.msra.mxu0 0
        %941 = vmatprep.subr.bf16.mxu0 0
        %942 = vmatpush1.bf16.xpose.msra.mxu0 0
        %943 = vmatprep.subr.bf16.mxu0 0
        %944 = vmatpush1.bf16.xpose.msra.mxu0 0
        %945 = vmatprep.subr.bf16.mxu0 0
        %946 = vmatpush1.bf16.xpose.msra.mxu0 0
        %947 = vmatprep.subr.bf16.mxu0 0
        %948 = vmatpush1.bf16.xpose.msra.mxu0 0
        %949 = vmatprep.subr.bf16.mxu0 0
        %950 = vmatpush1.bf16.xpose.msra.mxu0 0
        %951 = vmatprep.subr.bf16.mxu0 0
        %952 = vmatpush1.bf16.xpose.msra.mxu0 0
        %953 = vmatprep.subr.bf16.mxu0 0
        %954 = vmatpush1.bf16.xpose.msra.mxu0 0
        %955 = vmatprep.subr.bf16.mxu0 0
        %956 = vmatpush1.bf16.xpose.msra.mxu0 0
        %957 = vmatprep.subr.bf16.mxu0 0
        %958 = vmatpush1.bf16.xpose.msra.mxu0 0
        %959 = vmatprep.subr.bf16.mxu0 0
        %960 = vmatpush1.bf16.xpose.msra.mxu0 0
        %961 = vmatprep.subr.bf16.mxu0 0
        %962 = vmatpush1.bf16.xpose.msra.mxu0 0
        %963 = vmatprep.subr.bf16.mxu0 0
        %964 = vmatpush1.bf16.xpose.msra.mxu0 0
        %965 = vmatprep.subr.bf16.mxu0 0
        %966 = vmatpush1.bf16.xpose.msra.mxu0 0
        %967 = vmatprep.subr.bf16.mxu0 0
        %968 = vmatpush1.bf16.xpose.msra.mxu0 0
        %969 = vmatprep.mubr.bf16.mxu0 0
        %970 = vmatmul.mubr.bf16.gmra.mrb[0].mxu0 %v932
        %v971 = vpop.f32.mrb[0].mxu0
        %v972 = vadd.f32 0.0, %v971
        %v973 = vpop.f32.mrb[0].mxu0
        %v974 = vpop.f32.mrb[0].mxu0
        %v975 = vpop.f32.mrb[0].mxu0
        %976 = vdwg.mxu0
        %977 = vrot.lane.b32.xlu0 %v570, 120
        %v978 = vpop.permute.xlu0 %977
        %979 = vrot.lane.b32.xlu0 %v643, 120
        %v980 = vpop.permute.xlu0 %979
        %v982 = vsel %vm717, %v978, 0
        %v985 = vsel %vm717, %v980, 0
        %987 = vmatprep.subr.bf16.mxu0 0
        %988 = vmatpush1.bf16.xpose.msra.mxu0 %v985
        %989 = vmatprep.subr.bf16.mxu0 0
        %990 = vmatpush1.bf16.xpose.msra.mxu0 0
        %991 = vmatprep.subr.bf16.mxu0 0
        %992 = vmatpush1.bf16.xpose.msra.mxu0 0
        %993 = vmatprep.subr.bf16.mxu0 0
        %994 = vmatpush1.bf16.xpose.msra.mxu0 0
        %995 = vmatprep.subr.bf16.mxu0 0
        %996 = vmatpush1.bf16.xpose.msra.mxu0 0
        %997 = vmatprep.subr.bf16.mxu0 0
        %998 = vmatpush1.bf16.xpose.msra.mxu0 0
        %999 = vmatprep.subr.bf16.mxu0 0
        %1000 = vmatpush1.bf16.xpose.msra.mxu0 0
        %1001 = vmatprep.subr.bf16.mxu0 0
        %1002 = vmatpush1.bf16.xpose.msra.mxu0 0
        %1003 = vmatprep.subr.bf16.mxu0 0
        %1004 = vmatpush1.bf16.xpose.msra.mxu0 0
        %1005 = vmatprep.subr.bf16.mxu0 0
        %1006 = vmatpush1.bf16.xpose.msra.mxu0 0
        %1007 = vmatprep.subr.bf16.mxu0 0
        %1008 = vmatpush1.bf16.xpose.msra.mxu0 0
        %1009 = vmatprep.subr.bf16.mxu0 0
        %1010 = vmatpush1.bf16.xpose.msra.mxu0 0
        %1011 = vmatprep.subr.bf16.mxu0 0
        %1012 = vmatpush1.bf16.xpose.msra.mxu0 0
        %1013 = vmatprep.subr.bf16.mxu0 0
        %1014 = vmatpush1.bf16.xpose.msra.mxu0 0
        %1015 = vmatprep.subr.bf16.mxu0 0
        %1016 = vmatpush1.bf16.xpose.msra.mxu0 0
        %1017 = vmatprep.subr.bf16.mxu0 0
        %1018 = vmatpush1.bf16.xpose.msra.mxu0 0
        %1019 = vmatprep.mubr.bf16.mxu0 0
        %1020 = vmatmul.mubr.bf16.gmra.mrb[0].mxu0 %v982
        %v1021 = vpop.f32.mrb[0].mxu0
        %v1022 = vadd.f32 0.0, %v1021
        %v1023 = vpop.f32.mrb[0].mxu0
        %v1024 = vpop.f32.mrb[0].mxu0
        %v1025 = vpop.f32.mrb[0].mxu0
        %1026 = vdwg.mxu0
        %v1027 = vsel %vm717, %v972, -inf
        %1028 = vmax.xlane.f32.xlu0 %v1027
        %v1029 = vpop.xlane.xlu0 %1028
        %v1030 = vsel %vm717, %v1022, -inf
        %1031 = vmax.xlane.f32.xlu0 %v1030
        %v1032 = vpop.xlane.xlu0 %1031
        %v1033 = vsub.f32 %v972, %v1029
        %v1034 = vsub.f32 %v1022, %v1032
        %v1035 = vmul.f32 %v1033, 1.442695
        %v1036 = vpow.pop %v1035
        %v1037 = vmul.f32 %v1034, 1.442695
        %v1038 = vpow.pop %v1037
        %v1039 = vsel %vm717, %v1036, 0.0
        %1040 = vadd.xlane.f32.xlu0 %v1039
        %v1041 = vpop.xlane.xlu0 %1040
        %v1042 = vsel %vm717, %v1038, 0.0
        %1043 = vadd.xlane.f32.xlu0 %v1042
        %v1044 = vpop.xlane.xlu0 %1043
        %v1045 = vrcp.pop %v1041
        %v1046 = vrcp.pop %v1044
        %v1047 = vpack.c.bf16 %v1036, %v1036
        %v1048 = vpack.c.bf16 %v1038, %v1038
        %1049 = vrot.lane.b32.xlu0 %v715, 120
        %v1050 = vpop.permute.xlu0 %1049
        %v1052 = vsel %vm717, %v1047, 0
        %v1055 = vsel %vm835, %v1050, 0
        %1057 = vmatprep.subr.bf16.mxu0 0
        %1058 = vmatpush1.bf16.msra.mxu0 %v1055
        %1059 = vmatprep.subr.bf16.mxu0 0
        %1060 = vmatpush1.bf16.msra.mxu0 0
        %1061 = vmatprep.subr.bf16.mxu0 0
        %1062 = vmatpush1.bf16.msra.mxu0 0
        %1063 = vmatprep.subr.bf16.mxu0 0
        %1064 = vmatpush1.bf16.msra.mxu0 0
        %1065 = vmatprep.subr.bf16.mxu0 0
        %1066 = vmatpush1.bf16.msra.mxu0 0
        %1067 = vmatprep.subr.bf16.mxu0 0
        %1068 = vmatpush1.bf16.msra.mxu0 0
        %1069 = vmatprep.subr.bf16.mxu0 0
        %1070 = vmatpush1.bf16.msra.mxu0 0
        %1071 = vmatprep.subr.bf16.mxu0 0
        %1072 = vmatpush1.bf16.msra.mxu0 0
        %1073 = vmatprep.subr.bf16.mxu0 0
        %1074 = vmatpush1.bf16.msra.mxu0 0
        %1075 = vmatprep.subr.bf16.mxu0 0
        %1076 = vmatpush1.bf16.msra.mxu0 0
        %1077 = vmatprep.subr.bf16.mxu0 0
        %1078 = vmatpush1.bf16.msra.mxu0 0
        %1079 = vmatprep.subr.bf16.mxu0 0
        %1080 = vmatpush1.bf16.msra.mxu0 0
        %1081 = vmatprep.subr.bf16.mxu0 0
        %1082 = vmatpush1.bf16.msra.mxu0 0
        %1083 = vmatprep.subr.bf16.mxu0 0
        %1084 = vmatpush1.bf16.msra.mxu0 0
        %1085 = vmatprep.subr.bf16.mxu0 0
        %1086 = vmatpush1.bf16.msra.mxu0 0
        %1087 = vmatprep.subr.bf16.mxu0 0
        %1088 = vmatpush1.bf16.msra.mxu0 0
        %1089 = vmatprep.mubr.bf16.mxu0 0
        %1090 = vmatmul.mubr.bf16.gmra.mrb[0].mxu0 %v1052
        %v1091 = vpop.f32.mrb[0].mxu0
        %v1092 = vadd.f32 0.0, %v1091
        %v1093 = vpop.f32.mrb[0].mxu0
        %v1094 = vpop.f32.mrb[0].mxu0
        %v1095 = vpop.f32.mrb[0].mxu0
        %1096 = vdwg.mxu0
        %1097 = vrot.lane.b32.xlu0 %v716, 120
        %v1098 = vpop.permute.xlu0 %1097
        %v1100 = vsel %vm717, %v1048, 0
        %v1103 = vsel %vm835, %v1098, 0
        %1105 = vmatprep.subr.bf16.mxu0 0
        %1106 = vmatpush1.bf16.msra.mxu0 %v1103
        %1107 = vmatprep.subr.bf16.mxu0 0
        %1108 = vmatpush1.bf16.msra.mxu0 0
        %1109 = vmatprep.subr.bf16.mxu0 0
        %1110 = vmatpush1.bf16.msra.mxu0 0
        %1111 = vmatprep.subr.bf16.mxu0 0
        %1112 = vmatpush1.bf16.msra.mxu0 0
        %1113 = vmatprep.subr.bf16.mxu0 0
        %1114 = vmatpush1.bf16.msra.mxu0 0
        %1115 = vmatprep.subr.bf16.mxu0 0
        %1116 = vmatpush1.bf16.msra.mxu0 0
        %1117 = vmatprep.subr.bf16.mxu0 0
        %1118 = vmatpush1.bf16.msra.mxu0 0
        %1119 = vmatprep.subr.bf16.mxu0 0
        %1120 = vmatpush1.bf16.msra.mxu0 0
        %1121 = vmatprep.subr.bf16.mxu0 0
        %1122 = vmatpush1.bf16.msra.mxu0 0
        %1123 = vmatprep.subr.bf16.mxu0 0
        %1124 = vmatpush1.bf16.msra.mxu0 0
        %1125 = vmatprep.subr.bf16.mxu0 0
        %1126 = vmatpush1.bf16.msra.mxu0 0
        %1127 = vmatprep.subr.bf16.mxu0 0
        %1128 = vmatpush1.bf16.msra.mxu0 0
        %1129 = vmatprep.subr.bf16.mxu0 0
        %1130 = vmatpush1.bf16.msra.mxu0 0
        %1131 = vmatprep.subr.bf16.mxu0 0
        %1132 = vmatpush1.bf16.msra.mxu0 0
        %1133 = vmatprep.subr.bf16.mxu0 0
        %1134 = vmatpush1.bf16.msra.mxu0 0
        %1135 = vmatprep.subr.bf16.mxu0 0
        %1136 = vmatpush1.bf16.msra.mxu0 0
        %1137 = vmatprep.mubr.bf16.mxu0 0
        %1138 = vmatmul.mubr.bf16.gmra.mrb[0].mxu0 %v1100
        %v1139 = vpop.f32.mrb[0].mxu0
        %v1140 = vadd.f32 0.0, %v1139
        %v1141 = vpop.f32.mrb[0].mxu0
        %v1142 = vpop.f32.mrb[0].mxu0
        %v1143 = vpop.f32.mrb[0].mxu0
        %1144 = vdwg.mxu0
        %v1145 = vmul.f32 %v1092, %v1045
        %v1146 = vmul.f32 %v1140, %v1046
        %1147 = vrot.lane.b32.xlu0 %v569, 112
        %v1148 = vpop.permute.xlu0 %1147
        %1149 = vrot.lane.b32.xlu0 %v642, 112
        %v1150 = vpop.permute.xlu0 %1149
        %v1152 = vsel %vm717, %v1148, 0
        %v1155 = vsel %vm717, %v1150, 0
        %1157 = vmatprep.subr.bf16.mxu0 0
        %1158 = vmatpush1.bf16.xpose.msra.mxu0 %v1155
        %1159 = vmatprep.subr.bf16.mxu0 0
        %1160 = vmatpush1.bf16.xpose.msra.mxu0 0
        %1161 = vmatprep.subr.bf16.mxu0 0
        %1162 = vmatpush1.bf16.xpose.msra.mxu0 0
        %1163 = vmatprep.subr.bf16.mxu0 0
        %1164 = vmatpush1.bf16.xpose.msra.mxu0 0
        %1165 = vmatprep.subr.bf16.mxu0 0
        %1166 = vmatpush1.bf16.xpose.msra.mxu0 0
        %1167 = vmatprep.subr.bf16.mxu0 0
        %1168 = vmatpush1.bf16.xpose.msra.mxu0 0
        %1169 = vmatprep.subr.bf16.mxu0 0
        %1170 = vmatpush1.bf16.xpose.msra.mxu0 0
        %1171 = vmatprep.subr.bf16.mxu0 0
        %1172 = vmatpush1.bf16.xpose.msra.mxu0 0
        %1173 = vmatprep.subr.bf16.mxu0 0
        %1174 = vmatpush1.bf16.xpose.msra.mxu0 0
        %1175 = vmatprep.subr.bf16.mxu0 0
        %1176 = vmatpush1.bf16.xpose.msra.mxu0 0
        %1177 = vmatprep.subr.bf16.mxu0 0
        %1178 = vmatpush1.bf16.xpose.msra.mxu0 0
        %1179 = vmatprep.subr.bf16.mxu0 0
        %1180 = vmatpush1.bf16.xpose.msra.mxu0 0
        %1181 = vmatprep.subr.bf16.mxu0 0
        %1182 = vmatpush1.bf16.xpose.msra.mxu0 0
        %1183 = vmatprep.subr.bf16.mxu0 0
        %1184 = vmatpush1.bf16.xpose.msra.mxu0 0
        %1185 = vmatprep.subr.bf16.mxu0 0
        %1186 = vmatpush1.bf16.xpose.msra.mxu0 0
        %1187 = vmatprep.subr.bf16.mxu0 0
        %1188 = vmatpush1.bf16.xpose.msra.mxu0 0
        %1189 = vmatprep.mubr.bf16.mxu0 0
        %1190 = vmatmul.mubr.bf16.gmra.mrb[0].mxu0 %v1152
        %v1191 = vpop.f32.mrb[0].mxu0
        %v1192 = vadd.f32 0.0, %v1191
        %v1193 = vpop.f32.mrb[0].mxu0
        %v1194 = vpop.f32.mrb[0].mxu0
        %v1195 = vpop.f32.mrb[0].mxu0
        %1196 = vdwg.mxu0
        %1197 = vrot.lane.b32.xlu0 %v570, 112
        %v1198 = vpop.permute.xlu0 %1197
        %1199 = vrot.lane.b32.xlu0 %v643, 112
        %v1200 = vpop.permute.xlu0 %1199
        %v1202 = vsel %vm717, %v1198, 0
        %v1205 = vsel %vm717, %v1200, 0
        %1207 = vmatprep.subr.bf16.mxu0 0
        %1208 = vmatpush1.bf16.xpose.msra.mxu0 %v1205
        %1209 = vmatprep.subr.bf16.mxu0 0
        %1210 = vmatpush1.bf16.xpose.msra.mxu0 0
        %1211 = vmatprep.subr.bf16.mxu0 0
        %1212 = vmatpush1.bf16.xpose.msra.mxu0 0
        %1213 = vmatprep.subr.bf16.mxu0 0
        %1214 = vmatpush1.bf16.xpose.msra.mxu0 0
        %1215 = vmatprep.subr.bf16.mxu0 0
        %1216 = vmatpush1.bf16.xpose.msra.mxu0 0
        %1217 = vmatprep.subr.bf16.mxu0 0
        %1218 = vmatpush1.bf16.xpose.msra.mxu0 0
        %1219 = vmatprep.subr.bf16.mxu0 0
        %1220 = vmatpush1.bf16.xpose.msra.mxu0 0
        %1221 = vmatprep.subr.bf16.mxu0 0
        %1222 = vmatpush1.bf16.xpose.msra.mxu0 0
        %1223 = vmatprep.subr.bf16.mxu0 0
        %1224 = vmatpush1.bf16.xpose.msra.mxu0 0
        %1225 = vmatprep.subr.bf16.mxu0 0
        %1226 = vmatpush1.bf16.xpose.msra.mxu0 0
        %1227 = vmatprep.subr.bf16.mxu0 0
        %1228 = vmatpush1.bf16.xpose.msra.mxu0 0
        %1229 = vmatprep.subr.bf16.mxu0 0
        %1230 = vmatpush1.bf16.xpose.msra.mxu0 0
        %1231 = vmatprep.subr.bf16.mxu0 0
        %1232 = vmatpush1.bf16.xpose.msra.mxu0 0
        %1233 = vmatprep.subr.bf16.mxu0 0
        %1234 = vmatpush1.bf16.xpose.msra.mxu0 0
        %1235 = vmatprep.subr.bf16.mxu0 0
        %1236 = vmatpush1.bf16.xpose.msra.mxu0 0
        %1237 = vmatprep.subr.bf16.mxu0 0
        %1238 = vmatpush1.bf16.xpose.msra.mxu0 0
        %1239 = vmatprep.mubr.bf16.mxu0 0
        %1240 = vmatmul.mubr.bf16.gmra.mrb[0].mxu0 %v1202
        %v1241 = vpop.f32.mrb[0].mxu0
        %v1242 = vadd.f32 0.0, %v1241
        %v1243 = vpop.f32.mrb[0].mxu0
        %v1244 = vpop.f32.mrb[0].mxu0
        %v1245 = vpop.f32.mrb[0].mxu0
        %1246 = vdwg.mxu0
        %v1247 = vsel %vm717, %v1192, -inf
        %1248 = vmax.xlane.f32.xlu0 %v1247
        %v1249 = vpop.xlane.xlu0 %1248
        %v1250 = vsel %vm717, %v1242, -inf
        %1251 = vmax.xlane.f32.xlu0 %v1250
        %v1252 = vpop.xlane.xlu0 %1251
        %v1253 = vsub.f32 %v1192, %v1249
        %v1254 = vsub.f32 %v1242, %v1252
        %v1255 = vmul.f32 %v1253, 1.442695
        %v1256 = vpow.pop %v1255
        %v1257 = vmul.f32 %v1254, 1.442695
        %v1258 = vpow.pop %v1257
        %v1259 = vsel %vm717, %v1256, 0.0
        %1260 = vadd.xlane.f32.xlu0 %v1259
        %v1261 = vpop.xlane.xlu0 %1260
        %v1262 = vsel %vm717, %v1258, 0.0
        %1263 = vadd.xlane.f32.xlu0 %v1262
        %v1264 = vpop.xlane.xlu0 %1263
        %v1265 = vrcp.pop %v1261
        %v1266 = vrcp.pop %v1264
        %v1267 = vpack.c.bf16 %v1256, %v1256
        %v1268 = vpack.c.bf16 %v1258, %v1258
        %1269 = vrot.lane.b32.xlu0 %v715, 112
        %v1270 = vpop.permute.xlu0 %1269
        %v1272 = vsel %vm717, %v1267, 0
        %v1275 = vsel %vm835, %v1270, 0
        %1277 = vmatprep.subr.bf16.mxu0 0
        %1278 = vmatpush1.bf16.msra.mxu0 %v1275
        %1279 = vmatprep.subr.bf16.mxu0 0
        %1280 = vmatpush1.bf16.msra.mxu0 0
        %1281 = vmatprep.subr.bf16.mxu0 0
        %1282 = vmatpush1.bf16.msra.mxu0 0
        %1283 = vmatprep.subr.bf16.mxu0 0
        %1284 = vmatpush1.bf16.msra.mxu0 0
        %1285 = vmatprep.subr.bf16.mxu0 0
        %1286 = vmatpush1.bf16.msra.mxu0 0
        %1287 = vmatprep.subr.bf16.mxu0 0
        %1288 = vmatpush1.bf16.msra.mxu0 0
        %1289 = vmatprep.subr.bf16.mxu0 0
        %1290 = vmatpush1.bf16.msra.mxu0 0
        %1291 = vmatprep.subr.bf16.mxu0 0
        %1292 = vmatpush1.bf16.msra.mxu0 0
        %1293 = vmatprep.subr.bf16.mxu0 0
        %1294 = vmatpush1.bf16.msra.mxu0 0
        %1295 = vmatprep.subr.bf16.mxu0 0
        %1296 = vmatpush1.bf16.msra.mxu0 0
        %1297 = vmatprep.subr.bf16.mxu0 0
        %1298 = vmatpush1.bf16.msra.mxu0 0
        %1299 = vmatprep.subr.bf16.mxu0 0
        %1300 = vmatpush1.bf16.msra.mxu0 0
        %1301 = vmatprep.subr.bf16.mxu0 0
        %1302 = vmatpush1.bf16.msra.mxu0 0
        %1303 = vmatprep.subr.bf16.mxu0 0
        %1304 = vmatpush1.bf16.msra.mxu0 0
        %1305 = vmatprep.subr.bf16.mxu0 0
        %1306 = vmatpush1.bf16.msra.mxu0 0
        %1307 = vmatprep.subr.bf16.mxu0 0
        %1308 = vmatpush1.bf16.msra.mxu0 0
        %1309 = vmatprep.mubr.bf16.mxu0 0
        %1310 = vmatmul.mubr.bf16.gmra.mrb[0].mxu0 %v1272
        %v1311 = vpop.f32.mrb[0].mxu0
        %v1312 = vadd.f32 0.0, %v1311
        %v1313 = vpop.f32.mrb[0].mxu0
        %v1314 = vpop.f32.mrb[0].mxu0
        %v1315 = vpop.f32.mrb[0].mxu0
        %1316 = vdwg.mxu0
        %1317 = vrot.lane.b32.xlu0 %v716, 112
        %v1318 = vpop.permute.xlu0 %1317
        %v1320 = vsel %vm717, %v1268, 0
        %v1323 = vsel %vm835, %v1318, 0
        %1325 = vmatprep.subr.bf16.mxu0 0
        %1326 = vmatpush1.bf16.msra.mxu0 %v1323
        %1327 = vmatprep.subr.bf16.mxu0 0
        %1328 = vmatpush1.bf16.msra.mxu0 0
        %1329 = vmatprep.subr.bf16.mxu0 0
        %1330 = vmatpush1.bf16.msra.mxu0 0
        %1331 = vmatprep.subr.bf16.mxu0 0
        %1332 = vmatpush1.bf16.msra.mxu0 0
        %1333 = vmatprep.subr.bf16.mxu0 0
        %1334 = vmatpush1.bf16.msra.mxu0 0
        %1335 = vmatprep.subr.bf16.mxu0 0
        %1336 = vmatpush1.bf16.msra.mxu0 0
        %1337 = vmatprep.subr.bf16.mxu0 0
        %1338 = vmatpush1.bf16.msra.mxu0 0
        %1339 = vmatprep.subr.bf16.mxu0 0
        %1340 = vmatpush1.bf16.msra.mxu0 0
        %1341 = vmatprep.subr.bf16.mxu0 0
        %1342 = vmatpush1.bf16.msra.mxu0 0
        %1343 = vmatprep.subr.bf16.mxu0 0
        %1344 = vmatpush1.bf16.msra.mxu0 0
        %1345 = vmatprep.subr.bf16.mxu0 0
        %1346 = vmatpush1.bf16.msra.mxu0 0
        %1347 = vmatprep.subr.bf16.mxu0 0
        %1348 = vmatpush1.bf16.msra.mxu0 0
        %1349 = vmatprep.subr.bf16.mxu0 0
        %1350 = vmatpush1.bf16.msra.mxu0 0
        %1351 = vmatprep.subr.bf16.mxu0 0
        %1352 = vmatpush1.bf16.msra.mxu0 0
        %1353 = vmatprep.subr.bf16.mxu0 0
        %1354 = vmatpush1.bf16.msra.mxu0 0
        %1355 = vmatprep.subr.bf16.mxu0 0
        %1356 = vmatpush1.bf16.msra.mxu0 0
        %1357 = vmatprep.mubr.bf16.mxu0 0
        %1358 = vmatmul.mubr.bf16.gmra.mrb[0].mxu0 %v1320
        %v1359 = vpop.f32.mrb[0].mxu0
        %v1360 = vadd.f32 0.0, %v1359
        %v1361 = vpop.f32.mrb[0].mxu0
        %v1362 = vpop.f32.mrb[0].mxu0
        %v1363 = vpop.f32.mrb[0].mxu0
        %1364 = vdwg.mxu0
        %v1365 = vmul.f32 %v1312, %v1265
        %v1366 = vmul.f32 %v1360, %v1266
        %1367 = vrot.lane.b32.xlu0 %v569, 104
        %v1368 = vpop.permute.xlu0 %1367
        %1369 = vrot.lane.b32.xlu0 %v642, 104
        %v1370 = vpop.permute.xlu0 %1369
        %v1372 = vsel %vm717, %v1368, 0
        %v1375 = vsel %vm717, %v1370, 0
        %1377 = vmatprep.subr.bf16.mxu0 0
        %1378 = vmatpush1.bf16.xpose.msra.mxu0 %v1375
        %1379 = vmatprep.subr.bf16.mxu0 0
        %1380 = vmatpush1.bf16.xpose.msra.mxu0 0
        %1381 = vmatprep.subr.bf16.mxu0 0
        %1382 = vmatpush1.bf16.xpose.msra.mxu0 0
        %1383 = vmatprep.subr.bf16.mxu0 0
        %1384 = vmatpush1.bf16.xpose.msra.mxu0 0
        %1385 = vmatprep.subr.bf16.mxu0 0
        %1386 = vmatpush1.bf16.xpose.msra.mxu0 0
        %1387 = vmatprep.subr.bf16.mxu0 0
        %1388 = vmatpush1.bf16.xpose.msra.mxu0 0
        %1389 = vmatprep.subr.bf16.mxu0 0
        %1390 = vmatpush1.bf16.xpose.msra.mxu0 0
        %1391 = vmatprep.subr.bf16.mxu0 0
        %1392 = vmatpush1.bf16.xpose.msra.mxu0 0
        %1393 = vmatprep.subr.bf16.mxu0 0
        %1394 = vmatpush1.bf16.xpose.msra.mxu0 0
        %1395 = vmatprep.subr.bf16.mxu0 0
        %1396 = vmatpush1.bf16.xpose.msra.mxu0 0
        %1397 = vmatprep.subr.bf16.mxu0 0
        %1398 = vmatpush1.bf16.xpose.msra.mxu0 0
        %1399 = vmatprep.subr.bf16.mxu0 0
        %1400 = vmatpush1.bf16.xpose.msra.mxu0 0
        %1401 = vmatprep.subr.bf16.mxu0 0
        %1402 = vmatpush1.bf16.xpose.msra.mxu0 0
        %1403 = vmatprep.subr.bf16.mxu0 0
        %1404 = vmatpush1.bf16.xpose.msra.mxu0 0
        %1405 = vmatprep.subr.bf16.mxu0 0
        %1406 = vmatpush1.bf16.xpose.msra.mxu0 0
        %1407 = vmatprep.subr.bf16.mxu0 0
        %1408 = vmatpush1.bf16.xpose.msra.mxu0 0
        %1409 = vmatprep.mubr.bf16.mxu0 0
        %1410 = vmatmul.mubr.bf16.gmra.mrb[0].mxu0 %v1372
        %v1411 = vpop.f32.mrb[0].mxu0
        %v1412 = vadd.f32 0.0, %v1411
        %v1413 = vpop.f32.mrb[0].mxu0
        %v1414 = vpop.f32.mrb[0].mxu0
        %v1415 = vpop.f32.mrb[0].mxu0
        %1416 = vdwg.mxu0
        %1417 = vrot.lane.b32.xlu0 %v570, 104
        %v1418 = vpop.permute.xlu0 %1417
        %1419 = vrot.lane.b32.xlu0 %v643, 104
        %v1420 = vpop.permute.xlu0 %1419
        %v1422 = vsel %vm717, %v1418, 0
        %v1425 = vsel %vm717, %v1420, 0
        %1427 = vmatprep.subr.bf16.mxu0 0
        %1428 = vmatpush1.bf16.xpose.msra.mxu0 %v1425
        %1429 = vmatprep.subr.bf16.mxu0 0
        %1430 = vmatpush1.bf16.xpose.msra.mxu0 0
        %1431 = vmatprep.subr.bf16.mxu0 0
        %1432 = vmatpush1.bf16.xpose.msra.mxu0 0
        %1433 = vmatprep.subr.bf16.mxu0 0
        %1434 = vmatpush1.bf16.xpose.msra.mxu0 0
        %1435 = vmatprep.subr.bf16.mxu0 0
        %1436 = vmatpush1.bf16.xpose.msra.mxu0 0
        %1437 = vmatprep.subr.bf16.mxu0 0
        %1438 = vmatpush1.bf16.xpose.msra.mxu0 0
        %1439 = vmatprep.subr.bf16.mxu0 0
        %1440 = vmatpush1.bf16.xpose.msra.mxu0 0
        %1441 = vmatprep.subr.bf16.mxu0 0
        %1442 = vmatpush1.bf16.xpose.msra.mxu0 0
        %1443 = vmatprep.subr.bf16.mxu0 0
        %1444 = vmatpush1.bf16.xpose.msra.mxu0 0
        %1445 = vmatprep.subr.bf16.mxu0 0
        %1446 = vmatpush1.bf16.xpose.msra.mxu0 0
        %1447 = vmatprep.subr.bf16.mxu0 0
        %1448 = vmatpush1.bf16.xpose.msra.mxu0 0
        %1449 = vmatprep.subr.bf16.mxu0 0
        %1450 = vmatpush1.bf16.xpose.msra.mxu0 0
        %1451 = vmatprep.subr.bf16.mxu0 0
        %1452 = vmatpush1.bf16.xpose.msra.mxu0 0
        %1453 = vmatprep.subr.bf16.mxu0 0
        %1454 = vmatpush1.bf16.xpose.msra.mxu0 0
        %1455 = vmatprep.subr.bf16.mxu0 0
        %1456 = vmatpush1.bf16.xpose.msra.mxu0 0
        %1457 = vmatprep.subr.bf16.mxu0 0
        %1458 = vmatpush1.bf16.xpose.msra.mxu0 0
        %1459 = vmatprep.mubr.bf16.mxu0 0
        %1460 = vmatmul.mubr.bf16.gmra.mrb[0].mxu0 %v1422
        %v1461 = vpop.f32.mrb[0].mxu0
        %v1462 = vadd.f32 0.0, %v1461
        %v1463 = vpop.f32.mrb[0].mxu0
        %v1464 = vpop.f32.mrb[0].mxu0
        %v1465 = vpop.f32.mrb[0].mxu0
        %1466 = vdwg.mxu0
        %v1467 = vsel %vm717, %v1412, -inf
        %1468 = vmax.xlane.f32.xlu0 %v1467
        %v1469 = vpop.xlane.xlu0 %1468
        %v1470 = vsel %vm717, %v1462, -inf
        %1471 = vmax.xlane.f32.xlu0 %v1470
        %v1472 = vpop.xlane.xlu0 %1471
        %v1473 = vsub.f32 %v1412, %v1469
        %v1474 = vsub.f32 %v1462, %v1472
        %v1475 = vmul.f32 %v1473, 1.442695
        %v1476 = vpow.pop %v1475
        %v1477 = vmul.f32 %v1474, 1.442695
        %v1478 = vpow.pop %v1477
        %v1479 = vsel %vm717, %v1476, 0.0
        %1480 = vadd.xlane.f32.xlu0 %v1479
        %v1481 = vpop.xlane.xlu0 %1480
        %v1482 = vsel %vm717, %v1478, 0.0
        %1483 = vadd.xlane.f32.xlu0 %v1482
        %v1484 = vpop.xlane.xlu0 %1483
        %v1485 = vrcp.pop %v1481
        %v1486 = vrcp.pop %v1484
        %v1487 = vpack.c.bf16 %v1476, %v1476
        %v1488 = vpack.c.bf16 %v1478, %v1478
        %1489 = vrot.lane.b32.xlu0 %v715, 104
        %v1490 = vpop.permute.xlu0 %1489
        %v1492 = vsel %vm717, %v1487, 0
        %v1495 = vsel %vm835, %v1490, 0
        %1497 = vmatprep.subr.bf16.mxu0 0
        %1498 = vmatpush1.bf16.msra.mxu0 %v1495
        %1499 = vmatprep.subr.bf16.mxu0 0
        %1500 = vmatpush1.bf16.msra.mxu0 0
        %1501 = vmatprep.subr.bf16.mxu0 0
        %1502 = vmatpush1.bf16.msra.mxu0 0
        %1503 = vmatprep.subr.bf16.mxu0 0
        %1504 = vmatpush1.bf16.msra.mxu0 0
        %1505 = vmatprep.subr.bf16.mxu0 0
        %1506 = vmatpush1.bf16.msra.mxu0 0
        %1507 = vmatprep.subr.bf16.mxu0 0
        %1508 = vmatpush1.bf16.msra.mxu0 0
        %1509 = vmatprep.subr.bf16.mxu0 0
        %1510 = vmatpush1.bf16.msra.mxu0 0
        %1511 = vmatprep.subr.bf16.mxu0 0
        %1512 = vmatpush1.bf16.msra.mxu0 0
        %1513 = vmatprep.subr.bf16.mxu0 0
        %1514 = vmatpush1.bf16.msra.mxu0 0
        %1515 = vmatprep.subr.bf16.mxu0 0
        %1516 = vmatpush1.bf16.msra.mxu0 0
        %1517 = vmatprep.subr.bf16.mxu0 0
        %1518 = vmatpush1.bf16.msra.mxu0 0
        %1519 = vmatprep.subr.bf16.mxu0 0
        %1520 = vmatpush1.bf16.msra.mxu0 0
        %1521 = vmatprep.subr.bf16.mxu0 0
        %1522 = vmatpush1.bf16.msra.mxu0 0
        %1523 = vmatprep.subr.bf16.mxu0 0
        %1524 = vmatpush1.bf16.msra.mxu0 0
        %1525 = vmatprep.subr.bf16.mxu0 0
        %1526 = vmatpush1.bf16.msra.mxu0 0
        %1527 = vmatprep.subr.bf16.mxu0 0
        %1528 = vmatpush1.bf16.msra.mxu0 0
        %1529 = vmatprep.mubr.bf16.mxu0 0
        %1530 = vmatmul.mubr.bf16.gmra.mrb[0].mxu0 %v1492
        %v1531 = vpop.f32.mrb[0].mxu0
        %v1532 = vadd.f32 0.0, %v1531
        %v1533 = vpop.f32.mrb[0].mxu0
        %v1534 = vpop.f32.mrb[0].mxu0
        %v1535 = vpop.f32.mrb[0].mxu0
        %1536 = vdwg.mxu0
        %1537 = vrot.lane.b32.xlu0 %v716, 104
        %v1538 = vpop.permute.xlu0 %1537
        %v1540 = vsel %vm717, %v1488, 0
        %v1543 = vsel %vm835, %v1538, 0
        %1545 = vmatprep.subr.bf16.mxu0 0
        %1546 = vmatpush1.bf16.msra.mxu0 %v1543
        %1547 = vmatprep.subr.bf16.mxu0 0
        %1548 = vmatpush1.bf16.msra.mxu0 0
        %1549 = vmatprep.subr.bf16.mxu0 0
        %1550 = vmatpush1.bf16.msra.mxu0 0
        %1551 = vmatprep.subr.bf16.mxu0 0
        %1552 = vmatpush1.bf16.msra.mxu0 0
        %1553 = vmatprep.subr.bf16.mxu0 0
        %1554 = vmatpush1.bf16.msra.mxu0 0
        %1555 = vmatprep.subr.bf16.mxu0 0
        %1556 = vmatpush1.bf16.msra.mxu0 0
        %1557 = vmatprep.subr.bf16.mxu0 0
        %1558 = vmatpush1.bf16.msra.mxu0 0
        %1559 = vmatprep.subr.bf16.mxu0 0
        %1560 = vmatpush1.bf16.msra.mxu0 0
        %1561 = vmatprep.subr.bf16.mxu0 0
        %1562 = vmatpush1.bf16.msra.mxu0 0
        %1563 = vmatprep.subr.bf16.mxu0 0
        %1564 = vmatpush1.bf16.msra.mxu0 0
        %1565 = vmatprep.subr.bf16.mxu0 0
        %1566 = vmatpush1.bf16.msra.mxu0 0
        %1567 = vmatprep.subr.bf16.mxu0 0
        %1568 = vmatpush1.bf16.msra.mxu0 0
        %1569 = vmatprep.subr.bf16.mxu0 0
        %1570 = vmatpush1.bf16.msra.mxu0 0
        %1571 = vmatprep.subr.bf16.mxu0 0
        %1572 = vmatpush1.bf16.msra.mxu0 0
        %1573 = vmatprep.subr.bf16.mxu0 0
        %1574 = vmatpush1.bf16.msra.mxu0 0
        %1575 = vmatprep.subr.bf16.mxu0 0
        %1576 = vmatpush1.bf16.msra.mxu0 0
        %1577 = vmatprep.mubr.bf16.mxu0 0
        %1578 = vmatmul.mubr.bf16.gmra.mrb[0].mxu0 %v1540
        %v1579 = vpop.f32.mrb[0].mxu0
        %v1580 = vadd.f32 0.0, %v1579
        %v1581 = vpop.f32.mrb[0].mxu0
        %v1582 = vpop.f32.mrb[0].mxu0
        %v1583 = vpop.f32.mrb[0].mxu0
        %1584 = vdwg.mxu0
        %v1585 = vmul.f32 %v1532, %v1485
        %v1586 = vmul.f32 %v1580, %v1486
        %1589 = vrot.lane.b32.xlu0 %v1145, 8
        %v1590 = vpop.permute.xlu0 %1589
        %1591 = vrot.lane.b32.xlu0 %v1146, 8
        %v1592 = vpop.permute.xlu0 %1591
        %1597 = vrot.lane.b32.xlu0 %v1365, 16
        %v1598 = vpop.permute.xlu0 %1597
        %1599 = vrot.lane.b32.xlu0 %v1366, 16
        %v1600 = vpop.permute.xlu0 %1599
        %1605 = vrot.lane.b32.xlu0 %v1585, 24
        %v1606 = vpop.permute.xlu0 %1605
        %1607 = vrot.lane.b32.xlu0 %v1586, 24
        %v1608 = vpop.permute.xlu0 %1607
        %v1611 = vsel %vm717, %v925, %v1590
        %v1612 = vsel %vm717, %v926, %v1592
        %vm1613 = vcmask 130048
        %v1614 = vsel %vm1613, %v1611, %v1598
        %v1615 = vsel %vm1613, %v1612, %v1600
        %vm1616 = vcmask 195584
        %v1617 = vsel %vm1616, %v1614, %v1606
        %v1618 = vsel %vm1616, %v1615, %v1608
        %v1619 = vpack.c.bf16 %v1617, %v1617
        %v1620 = vpack.c.bf16 %v1618, %v1618
        %vm1621 = vcmask 257024
        %1622 = vst.msk [vmem:[%s482] sm:$0xf] %vm1621, %v1619
        %1623 = vst.msk [vmem:[%s482 + $0x4] sm:$0xf] %vm1621, %v1620
        %s1624 = sand.u32 %s262, 1
        %s1625 = scalar_lea.sflag [#allocation4], %s1624
        %s1626 = sand.u32 %s262, 1
        %s1627 = smul.addr %s1626, 8
        %s1628 = scalar_lea.vmem [#allocation11], %s1627
        // Predicated region
        $region77: #{tpu_custom_call.1} parent=55 // pred_check
          %p1629 = pneg %p272
        $region78: #{tpu_custom_call.1} parent=55 // pred_check_branch
          %1631 = sbr.rel (%p1629) target = $region80
        $region79: #{tpu_custom_call.1} parent=55 // pred_region
          %s1632 = smul.u32 2, %s35
          %s1634 = ssub.s32 128, 128
          %1635 = vsyncadd %s1625, %s1634
          %s1636 = smul.addr %s34, 2
          %s1637 = sadd.s32 %s1632, %s1636
          %s1638 = smul.addr %s1637, 64
          %s1639 = scalar_lea.hbm %s9, %s1638
          %s1640 = sshll.u32 %s1628, 4
          %s1641 = int_to_ptr.vmem [resolvable:$true] %s1640
          %1646 = dma.vmem_to_hbm [thread:$0]  %s1641, 128, %s1639, %s1625, 64, 64, 4
        $region80: #{tpu_custom_call.1} parent=55 // pred_fallthru
          _
      $region56: #{tpu_custom_call.1} parent=5 // pred_fallthru
        _
      %p1647 = scmp.le.s32.totalorder 2, %s25
      // Predicated region
      $region81: #{tpu_custom_call.1} parent=5 // pred_check
        %p1648 = pneg %p1647
      $region82: #{tpu_custom_call.1} parent=5 // pred_check_branch
        %1650 = sbr.rel (%p1648) target = $region84
      $region83: #{tpu_custom_call.1} parent=5 // pred_region
        %s1651 = ssub.s32 %s25, 2
        // Predicated region
        $region85: #{tpu_custom_call.1} parent=83 // pred_check
          %p1652 = pneg %p278
        $region86: #{tpu_custom_call.1} parent=83 // pred_check_branch
          %1654 = sbr.rel (%p1652) target = $region88
        $region87: #{tpu_custom_call.1} parent=83 // pred_region
          %s1655 = sand.u32 %s263, 1
          %s1656 = scalar_lea.sflag [#allocation4], %s1655
          %s1657 = sand.u32 %s263, 1
          %s1658 = smul.addr %s1657, 8
          %s1659 = scalar_lea.vmem [#allocation11], %s1658
          %1660 = dma.done %s1656, 128
        $region88: #{tpu_custom_call.1} parent=83 // pred_fallthru
          _
      $region84: #{tpu_custom_call.1} parent=5 // pred_fallthru
        _
    $region6: #{tpu_custom_call.1} parent=1 // loop_footer
      %s29 = sadd.s32 1, %s25
    $region7: #{tpu_custom_call.1} parent=1 // loop_footer_branch
      %24 = sbr.rel target = $region3
    $region8: #{tpu_custom_call.1} parent=1 // loop_exit
      _
    %1661 = vsyncpa [#allocation3], 1
    %s1662 = scalar_lea.sflag [#allocation3], 1
    %1663 = vsyncpa %s1662, 1
    %1664 = vsyncpa [#allocation6], 1
    %s1665 = scalar_lea.sflag [#allocation6], 1
    %1666 = vsyncpa %s1665, 1
    %1667 = vsyncpa [#allocation9], 1
    %1668 = vsyncpa [#allocation4], 1
    %s1669 = scalar_lea.sflag [#allocation4], 1
    %1670 = vsyncpa %s1669, 1

</llo_original>
